<compile_context>
chip_gen: v5e
topology: v5e:2x2
jax: 0.10.0
libtpu: 0.0.40
codegen_flags: <defaults>
</compile_context>

<pallas_src>
import functools

import jax
import jax.numpy as jnp
from jax import lax
from jax.experimental import pallas as pl
from jax.experimental.pallas import tpu as pltpu


# ----------------------------------------------------------------------------
# In-kernel helpers (f32 math)
# ----------------------------------------------------------------------------
def _layer_norm(x, gamma, beta, eps):
    # PyTorch nn.LayerNorm: biased variance over the last dim.
    mean = jnp.mean(x, axis=-1, keepdims=True)
    xc = x - mean
    var = jnp.mean(xc * xc, axis=-1, keepdims=True)
    inv = lax.rsqrt(var + eps)
    return xc * inv * gamma + beta


def _gelu_exact(x):
    # torch.nn.GELU default (exact, erf-based).
    return x * 0.5 * (1.0 + lax.erf(x * 0.7071067811865476))


# ----------------------------------------------------------------------------
# Fused transformer stack kernel: grid axis = layer index (sequential).
# The hidden state is carried in the resident output block (constant out index).
# ----------------------------------------------------------------------------
def _stack_kernel(
    mask_ref, x_ref,
    wq_ref, bq_ref, wk_ref, bk_ref, wv_ref, bv_ref,
    wo_ref, bo_ref, g1_ref, b1_ref,
    wi_ref, bi_ref, wo2_ref, bo2_ref, g2_ref, b2_ref,
    out_ref, ctx_ref,
    *, num_heads, eps, batch, seq,
):
    l = pl.program_id(0)

    # Seed the resident output block (the layer-to-layer carry) once.
    # NOTE: out_ref dtype is the model dtype (f32 here); if the model dtype were
    # narrower than f32 a separate f32 scratch carry would be needed.
    @pl.when(l == 0)
    def _():
        out_ref[...] = x_ref[...]

    x = out_ref[...].astype(jnp.float32)       # [B*S, H]  layer input (f32)
    BS, H = x.shape
    dH = H // num_heads

    x_bf = x.astype(jnp.bfloat16)

    # --- QKV projections: bf16 x bf16 -> f32 accumulate on the MXU ---
    # (1/sqrt(dH) is already folded into wq/bq on the host.)
    q = jnp.dot(x_bf, wq_ref[0], preferred_element_type=jnp.float32) + bq_ref[0]
    k = jnp.dot(x_bf, wk_ref[0], preferred_element_type=jnp.float32) + bk_ref[0]
    v = jnp.dot(x_bf, wv_ref[0], preferred_element_type=jnp.float32) + bv_ref[0]

    # --- head split to [heads*B, S, dH] (head-major batch) ---
    # Layout-safe ops only: lane slices, sublane reshapes, leading-dim concat.
    # TODO(synk): replace with a single pltpu.einshape head transpose at real sizes.
    def split_heads(t):
        parts = [
            t[:, h * dH:(h + 1) * dH].reshape(batch, seq, dH)
            for h in range(num_heads)
        ]
        return jnp.concatenate(parts, axis=0)      # [heads*B, S, dH]

    qh = split_heads(q).astype(jnp.bfloat16)
    kh = split_heads(k).astype(jnp.bfloat16)
    vh = split_heads(v).astype(jnp.bfloat16)

    # --- batched scaled dot-product attention over (head, batch) ---
    scores = jnp.einsum('bqd,bkd->bqk', qh, kh,
                        preferred_element_type=jnp.float32)
    scores = scores + mask_ref[...][:, None, :]    # additive key mask, bcast over q
    scores = scores - jnp.max(scores, axis=-1, keepdims=True)
    p = jnp.exp(scores)
    p = p * pl.reciprocal(jnp.sum(p, axis=-1, keepdims=True), approx=False)
    ctx_h = jnp.einsum('bqk,bkd->bqd', p.astype(jnp.bfloat16), vh,
                       preferred_element_type=jnp.float32)   # [heads*B, S, dH] f32

    # --- assemble per-head context into lane slices of one [B*S, H] VMEM buffer,
    #     then a single full-K output-projection GEMM ---
    for h in range(num_heads):
        ctx_ref[:, h * dH:(h + 1) * dH] = (
            ctx_h[h * batch:(h + 1) * batch].reshape(BS, dH))
    attn = jnp.dot(ctx_ref[...].astype(jnp.bfloat16), wo_ref[0],
                   preferred_element_type=jnp.float32) + bo_ref[0]

    # --- dropout(identity) + residual + LayerNorm (f32) ---
    attn_norm = _layer_norm(attn + x, g1_ref[0], b1_ref[0], eps)

    # --- intermediate: dense (bf16 MXU) + GELU (f32) ---
    inter = jnp.dot(attn_norm.astype(jnp.bfloat16), wi_ref[0],
                    preferred_element_type=jnp.float32) + bi_ref[0]
    inter = _gelu_exact(inter)

    # --- output: dense (bf16 MXU) + dropout(identity) + residual + LayerNorm ---
    out = jnp.dot(inter.astype(jnp.bfloat16), wo2_ref[0],
                  preferred_element_type=jnp.float32) + bo2_ref[0]
    out = _layer_norm(out + attn_norm, g2_ref[0], b2_ref[0], eps)

    # Carry the hidden state in the resident output block; Pallas writes it to HBM
    # once, after the last layer.
    out_ref[...] = out.astype(out_ref.dtype)


# ----------------------------------------------------------------------------
# Wrapper: one pallas_call over the whole stack
# ----------------------------------------------------------------------------
_PARAM_ORDER = (
    "wq", "bq", "wk", "bk", "wv", "bv", "wo", "bo",
    "ln1_g", "ln1_b", "wi", "bi", "wo2", "bo2", "ln2_g", "ln2_b",
)
_BF16_WEIGHTS = ("wq", "wk", "wv", "wo", "wi", "wo2")


def transformer_layer_list(x, mask_add, stacked_params, *, num_heads, eps):
    """TransformerLayerList.forward. x: [B,S,H]; mask_add: [B,S] additive key mask."""
    B, S, H = x.shape
    L = stacked_params["wq"].shape[0]
    I = stacked_params["wi"].shape[-1]
    dH = H // num_heads
    scale = dH ** -0.5

    x_flat = x.reshape(B * S, H)
    # head-major replication of the mask: row (h*B + b) <- mask[b]
    mask_hb = jnp.tile(mask_add, (num_heads, 1)).astype(jnp.float32)   # [heads*B, S]

    # Host-side param prep: fold attention scale into Wq/bq; bf16 the big matrices.
    params = dict(stacked_params)
    params["wq"] = params["wq"] * scale
    params["bq"] = params["bq"] * scale
    for name in _BF16_WEIGHTS:
        params[name] = params[name].astype(jnp.bfloat16)
    param_list = [params[name] for name in _PARAM_ORDER]

    def layer_spec(p):
        nrest = p.ndim - 1
        return pl.BlockSpec((1,) + p.shape[1:],
                            lambda l, _n=nrest: (l,) + (0,) * _n)

    in_specs = [
        pl.BlockSpec((B * num_heads, S), lambda l: (0, 0)),   # mask (resident)
        pl.BlockSpec((B * S, H), lambda l: (0, 0)),           # initial hidden state
    ] + [layer_spec(p) for p in param_list]

    # Advisory cost estimate for XLA's scheduler.
    flops_per_layer = (2 * B * S * H * H * 4            # QKV + W_O GEMMs
                       + 2 * B * S * H * I * 2          # FFN GEMMs
                       + 2 * num_heads * B * S * S * dH * 2)  # attention einsums
    transcendentals = L * (num_heads * B * S * S + B * S * I)  # softmax exp + GELU erf
    bytes_params = sum(int(p.size) * p.dtype.itemsize for p in param_list)
    bytes_accessed = bytes_params + 2 * B * S * H * 4 + int(mask_hb.size) * 4
    cost = pl.CostEstimate(flops=int(L * flops_per_layer),
                           transcendentals=int(transcendentals),
                           bytes_accessed=int(bytes_accessed))

    kernel = functools.partial(_stack_kernel, num_heads=num_heads, eps=eps,
                               batch=B, seq=S)

    out_flat = pl.pallas_call(
        kernel,
        out_shape=jax.ShapeDtypeStruct((B * S, H), x.dtype),
        grid_spec=pltpu.PrefetchScalarGridSpec(
            num_scalar_prefetch=0,
            grid=(L,),
            in_specs=in_specs,
            out_specs=pl.BlockSpec((B * S, H), lambda l: (0, 0)),
            # Single f32 scratch for per-head context assembly (W_O GEMM input).
            scratch_shapes=[pltpu.VMEM((B * S, H), jnp.float32)],
        ),
        # Layer axis carries the hidden state -> must be "arbitrary".
        compiler_params=pltpu.CompilerParams(
            dimension_semantics=("arbitrary",),
            vmem_limit_bytes=48 * 1024 * 1024,   # explicit budget; safe on v5e/v6e/v7x
        ),
        cost_estimate=cost,
    )(mask_hb, x_flat, *param_list)

    return out_flat.reshape(B, S, H)


# ----------------------------------------------------------------------------
# Deterministic parameter construction
# ----------------------------------------------------------------------------
def init_layer_params(key, hidden, intermediate):
    keys = jax.random.split(key, 6)

    def lin(k, din, dout):
        w = jax.random.normal(k, (din, dout), jnp.float32) * 0.02
        b = jnp.zeros((1, dout), jnp.float32)
        return w, b

    wq, bq = lin(keys[0], hidden, hidden)
    wk, bk = lin(keys[1], hidden, hidden)
    wv, bv = lin(keys[2], hidden, hidden)
    wo, bo = lin(keys[3], hidden, hidden)
    wi, bi = lin(keys[4], hidden, intermediate)
    wo2, bo2 = lin(keys[5], intermediate, hidden)
    return dict(
        wq=wq, bq=bq, wk=wk, bk=bk, wv=wv, bv=bv, wo=wo, bo=bo,
        ln1_g=jnp.ones((1, hidden), jnp.float32), ln1_b=jnp.zeros((1, hidden), jnp.float32),
        wi=wi, bi=bi, wo2=wo2, bo2=bo2,
        ln2_g=jnp.ones((1, hidden), jnp.float32), ln2_b=jnp.zeros((1, hidden), jnp.float32),
    )


def stack_layer_params(layer_params):
    return {k: jnp.stack([p[k] for p in layer_params], axis=0)
            for k in layer_params[0]}


# ----------------------------------------------------------------------------
# Pure-JAX reference (for correctness check; full f32)
# ----------------------------------------------------------------------------
def _reference_layer(x, mask_add, p, *, num_heads, eps):
    B, S, H = x.shape
    dH = H // num_heads

    def lin(t, w, b):
        return jnp.einsum('bsh,hd->bsd', t, w) + b[0]

    def ln(t, g, b_):
        m = jnp.mean(t, -1, keepdims=True)
        v_ = jnp.mean((t - m) ** 2, -1, keepdims=True)
        return (t - m) * lax.rsqrt(v_ + eps) * g[0] + b_[0]

    q = lin(x, p["wq"], p["bq"]).reshape(B, S, num_heads, dH).transpose(0, 2, 1, 3)
    k = lin(x, p["wk"], p["bk"]).reshape(B, S, num_heads, dH).transpose(0, 2, 1, 3)
    v = lin(x, p["wv"], p["bv"]).reshape(B, S, num_heads, dH).transpose(0, 2, 1, 3)
    scores = jnp.einsum('bhqd,bhkd->bhqk', q, k) * (dH ** -0.5)
    scores = scores + mask_add[:, None, None, :]
    probs = jax.nn.softmax(scores, axis=-1)
    ctx = jnp.einsum('bhqk,bhkd->bhqd', probs, v).transpose(0, 2, 1, 3).reshape(B, S, H)
    attn_norm = ln(lin(ctx, p["wo"], p["bo"]) + x, p["ln1_g"], p["ln1_b"])
    inter = jax.nn.gelu(lin(attn_norm, p["wi"], p["bi"]), approximate=False)
    out = lin(inter, p["wo2"], p["bo2"])
    return ln(out + attn_norm, p["ln2_g"], p["ln2_b"])


# ----------------------------------------------------------------------------
# Main
# ----------------------------------------------------------------------------
if __name__ == "__main__":
    # config: hidden_size=32, num_attention_heads=4, intermediate_size=64,
    #         num_hidden_layers=2, layer_norm_eps=1e-12, dropouts=0.1 (eval).
    B, S, H, I = 2, 8, 32, 64
    NUM_HEADS = 4
    NUM_LAYERS = 2
    EPS = 1e-12

    key = jax.random.PRNGKey(0)
    k_x, k_p = jax.random.split(key)

    hidden_states = jax.random.normal(k_x, (B, S, H), jnp.float32)

    # attention mask: 1 = keep, 0 = pad; batch 1 has its last 2 keys masked.
    keep = jnp.ones((B, S), jnp.float32).at[1, -2:].set(0.0)
    mask_add = (1.0 - keep) * (-1e9)  # additive bias on attention scores

    layer_keys = jax.random.split(k_p, NUM_LAYERS)
    layer_params = [init_layer_params(layer_keys[i], H, I) for i in range(NUM_LAYERS)]
    stacked = stack_layer_params(layer_params)

    out = transformer_layer_list(hidden_states, mask_add, stacked,
                                 num_heads=NUM_HEADS, eps=EPS)
    jax.block_until_ready(out)

    assert out.shape == (B, S, H) and out.dtype == jnp.float32
    assert bool(jnp.all(jnp.isfinite(out)))

    # correctness vs. pure-JAX f32 reference (bf16 matmul operands -> loose tolerance)
    ref = hidden_states
    for p in layer_params:
        ref = _reference_layer(ref, mask_add, p, num_heads=NUM_HEADS, eps=EPS)
    assert bool(jnp.allclose(out, ref, atol=5e-2, rtol=5e-2))

    print("KERNEL_OK")
</pallas_src>

<mosaic_0001>
module attributes {stable_mosaic.version = 11 : i64} {
  func.func @_stack_kernel(%arg0: i32, %arg1: memref<8x8xf32, #tpu.memory_space<vmem>>, %arg2: memref<16x32xf32, #tpu.memory_space<vmem>>, %arg3: memref<1x32x32xbf16, #tpu.memory_space<vmem>>, %arg4: memref<1x1x32xf32, #tpu.memory_space<vmem>>, %arg5: memref<1x32x32xbf16, #tpu.memory_space<vmem>>, %arg6: memref<1x1x32xf32, #tpu.memory_space<vmem>>, %arg7: memref<1x32x32xbf16, #tpu.memory_space<vmem>>, %arg8: memref<1x1x32xf32, #tpu.memory_space<vmem>>, %arg9: memref<1x32x32xbf16, #tpu.memory_space<vmem>>, %arg10: memref<1x1x32xf32, #tpu.memory_space<vmem>>, %arg11: memref<1x1x32xf32, #tpu.memory_space<vmem>>, %arg12: memref<1x1x32xf32, #tpu.memory_space<vmem>>, %arg13: memref<1x32x64xbf16, #tpu.memory_space<vmem>>, %arg14: memref<1x1x64xf32, #tpu.memory_space<vmem>>, %arg15: memref<1x64x32xbf16, #tpu.memory_space<vmem>>, %arg16: memref<1x1x32xf32, #tpu.memory_space<vmem>>, %arg17: memref<1x1x32xf32, #tpu.memory_space<vmem>>, %arg18: memref<1x1x32xf32, #tpu.memory_space<vmem>>, %arg19: memref<16x32xf32, #tpu.memory_space<vmem>>, %arg20: memref<16x32xf32, #tpu.memory_space<vmem>>) attributes {dimension_semantics = [#tpu.dimension_semantics<arbitrary>], iteration_bounds = array<i64: 2>, scalar_prefetch = 0 : i64, scratch_operands = 1 : i64, tpu.core_type = #tpu.core_type<tc>, window_params = [{pipeline_mode = #tpu.pipeline_mode<synchronous>, transform_indices = @transform_0, window_bounds = array<i64: 8, 8>}, {pipeline_mode = #tpu.pipeline_mode<synchronous>, transform_indices = @transform_1, window_bounds = array<i64: 16, 32>}, {transform_indices = @transform_2, window_bounds = array<i64: 1, 32, 32>}, {transform_indices = @transform_3, window_bounds = array<i64: 1, 1, 32>}, {transform_indices = @transform_4, window_bounds = array<i64: 1, 32, 32>}, {transform_indices = @transform_5, window_bounds = array<i64: 1, 1, 32>}, {transform_indices = @transform_6, window_bounds = array<i64: 1, 32, 32>}, {transform_indices = @transform_7, window_bounds = array<i64: 1, 1, 32>}, {transform_indices = @transform_8, window_bounds = array<i64: 1, 32, 32>}, {transform_indices = @transform_9, window_bounds = array<i64: 1, 1, 32>}, {transform_indices = @transform_10, window_bounds = array<i64: 1, 1, 32>}, {transform_indices = @transform_11, window_bounds = array<i64: 1, 1, 32>}, {transform_indices = @transform_12, window_bounds = array<i64: 1, 32, 64>}, {transform_indices = @transform_13, window_bounds = array<i64: 1, 1, 64>}, {transform_indices = @transform_14, window_bounds = array<i64: 1, 64, 32>}, {transform_indices = @transform_15, window_bounds = array<i64: 1, 1, 32>}, {transform_indices = @transform_16, window_bounds = array<i64: 1, 1, 32>}, {transform_indices = @transform_17, window_bounds = array<i64: 1, 1, 32>}, {pipeline_mode = #tpu.pipeline_mode<synchronous>, transform_indices = @transform_18, window_bounds = array<i64: 16, 32>}]} {
    %c0_i32 = arith.constant 0 : i32
    %0 = arith.cmpi eq, %arg0, %c0_i32 : i32
    %1 = arith.extui %0 : i1 to i32
    %c0_i32_0 = arith.constant 0 : i32
    %2 = arith.cmpi ne, %1, %c0_i32_0 : i32
    scf.if %2 {
      %c0_83 = arith.constant 0 : index
      %c0_84 = arith.constant 0 : index
      %169 = vector.load %arg2[%c0_83, %c0_84] : memref<16x32xf32, #tpu.memory_space<vmem>>, vector<16x32xf32>
      %c0_85 = arith.constant 0 : index
      %c0_86 = arith.constant 0 : index
      %170 = vector.load %arg19[%c0_85, %c0_86] : memref<16x32xf32, #tpu.memory_space<vmem>>, vector<16x32xf32>
      tpu.vector_store %arg19[%c0_85, %c0_86], %169 {strides = array<i32>} : memref<16x32xf32, #tpu.memory_space<vmem>>, vector<16x32xf32>,
    } else {
    }
    %c0 = arith.constant 0 : index
    %c0_1 = arith.constant 0 : index
    %3 = vector.load %arg19[%c0, %c0_1] : memref<16x32xf32, #tpu.memory_space<vmem>>, vector<16x32xf32>
    %4 = arith.truncf %3 : vector<16x32xf32> to vector<16x32xbf16>
    %c0_2 = arith.constant 0 : index
    %c0_3 = arith.constant 0 : index
    %c0_4 = arith.constant 0 : index
    %5 = vector.load %arg3[%c0_2, %c0_3, %c0_4] : memref<1x32x32xbf16, #tpu.memory_space<vmem>>, vector<1x32x32xbf16>
    %6 = vector.shape_cast %5 : vector<1x32x32xbf16> to vector<32x32xbf16>
    %cst = arith.constant dense<0.000000e+00> : vector<16x32xf32>
    %7 = tpu.matmul %4, %6, %cst {dimension_numbers = #tpu.dot_dimension_numbers<[1], [0], [0], [1], [0, 0, 1, 1], [], []>} : vector<16x32xbf16>, vector<32x32xbf16>, vector<16x32xf32> -> vector<16x32xf32>
    %c0_5 = arith.constant 0 : index
    %c0_6 = arith.constant 0 : index
    %c0_7 = arith.constant 0 : index
    %8 = vector.load %arg4[%c0_5, %c0_6, %c0_7] : memref<1x1x32xf32, #tpu.memory_space<vmem>>, vector<1x1x32xf32>
    %9 = vector.shape_cast %8 : vector<1x1x32xf32> to vector<1x32xf32>
    %10 = vector.broadcast %9 : vector<1x32xf32> to vector<16x32xf32>
    %11 = arith.addf %7, %10 : vector<16x32xf32>
    %c0_8 = arith.constant 0 : index
    %c0_9 = arith.constant 0 : index
    %c0_10 = arith.constant 0 : index
    %12 = vector.load %arg5[%c0_8, %c0_9, %c0_10] : memref<1x32x32xbf16, #tpu.memory_space<vmem>>, vector<1x32x32xbf16>
    %13 = vector.shape_cast %12 : vector<1x32x32xbf16> to vector<32x32xbf16>
    %cst_11 = arith.constant dense<0.000000e+00> : vector<16x32xf32>
    %14 = tpu.matmul %4, %13, %cst_11 {dimension_numbers = #tpu.dot_dimension_numbers<[1], [0], [0], [1], [0, 0, 1, 1], [], []>} : vector<16x32xbf16>, vector<32x32xbf16>, vector<16x32xf32> -> vector<16x32xf32>
    %c0_12 = arith.constant 0 : index
    %c0_13 = arith.constant 0 : index
    %c0_14 = arith.constant 0 : index
    %15 = vector.load %arg6[%c0_12, %c0_13, %c0_14] : memref<1x1x32xf32, #tpu.memory_space<vmem>>, vector<1x1x32xf32>
    %16 = vector.shape_cast %15 : vector<1x1x32xf32> to vector<1x32xf32>
    %17 = vector.broadcast %16 : vector<1x32xf32> to vector<16x32xf32>
    %18 = arith.addf %14, %17 : vector<16x32xf32>
    %c0_15 = arith.constant 0 : index
    %c0_16 = arith.constant 0 : index
    %c0_17 = arith.constant 0 : index
    %19 = vector.load %arg7[%c0_15, %c0_16, %c0_17] : memref<1x32x32xbf16, #tpu.memory_space<vmem>>, vector<1x32x32xbf16>
    %20 = vector.shape_cast %19 : vector<1x32x32xbf16> to vector<32x32xbf16>
    %cst_18 = arith.constant dense<0.000000e+00> : vector<16x32xf32>
    %21 = tpu.matmul %4, %20, %cst_18 {dimension_numbers = #tpu.dot_dimension_numbers<[1], [0], [0], [1], [0, 0, 1, 1], [], []>} : vector<16x32xbf16>, vector<32x32xbf16>, vector<16x32xf32> -> vector<16x32xf32>
    %c0_19 = arith.constant 0 : index
    %c0_20 = arith.constant 0 : index
    %c0_21 = arith.constant 0 : index
    %22 = vector.load %arg8[%c0_19, %c0_20, %c0_21] : memref<1x1x32xf32, #tpu.memory_space<vmem>>, vector<1x1x32xf32>
    %23 = vector.shape_cast %22 : vector<1x1x32xf32> to vector<1x32xf32>
    %24 = vector.broadcast %23 : vector<1x32xf32> to vector<16x32xf32>
    %25 = arith.addf %21, %24 : vector<16x32xf32>
    %26 = vector.extract_strided_slice %11 {offsets = [0, 0], sizes = [16, 8], strides = [1, 1]} : vector<16x32xf32> to vector<16x8xf32>
    %27 = vector.shape_cast %26 : vector<16x8xf32> to vector<2x8x8xf32>
    %28 = vector.extract_strided_slice %11 {offsets = [0, 8], sizes = [16, 8], strides = [1, 1]} : vector<16x32xf32> to vector<16x8xf32>
    %29 = vector.shape_cast %28 : vector<16x8xf32> to vector<2x8x8xf32>
    %30 = vector.extract_strided_slice %11 {offsets = [0, 16], sizes = [16, 8], strides = [1, 1]} : vector<16x32xf32> to vector<16x8xf32>
    %31 = vector.shape_cast %30 : vector<16x8xf32> to vector<2x8x8xf32>
    %32 = vector.extract_strided_slice %11 {offsets = [0, 24], sizes = [16, 8], strides = [1, 1]} : vector<16x32xf32> to vector<16x8xf32>
    %33 = vector.shape_cast %32 : vector<16x8xf32> to vector<2x8x8xf32>
    %34 = tpu.concatenate %27, %29, %31, %33 in 0 : vector<2x8x8xf32>, vector<2x8x8xf32>, vector<2x8x8xf32>, vector<2x8x8xf32> -> vector<8x8x8xf32>
    %35 = arith.truncf %34 : vector<8x8x8xf32> to vector<8x8x8xbf16>
    %36 = vector.extract_strided_slice %18 {offsets = [0, 0], sizes = [16, 8], strides = [1, 1]} : vector<16x32xf32> to vector<16x8xf32>
    %37 = vector.shape_cast %36 : vector<16x8xf32> to vector<2x8x8xf32>
    %38 = vector.extract_strided_slice %18 {offsets = [0, 8], sizes = [16, 8], strides = [1, 1]} : vector<16x32xf32> to vector<16x8xf32>
    %39 = vector.shape_cast %38 : vector<16x8xf32> to vector<2x8x8xf32>
    %40 = vector.extract_strided_slice %18 {offsets = [0, 16], sizes = [16, 8], strides = [1, 1]} : vector<16x32xf32> to vector<16x8xf32>
    %41 = vector.shape_cast %40 : vector<16x8xf32> to vector<2x8x8xf32>
    %42 = vector.extract_strided_slice %18 {offsets = [0, 24], sizes = [16, 8], strides = [1, 1]} : vector<16x32xf32> to vector<16x8xf32>
    %43 = vector.shape_cast %42 : vector<16x8xf32> to vector<2x8x8xf32>
    %44 = tpu.concatenate %37, %39, %41, %43 in 0 : vector<2x8x8xf32>, vector<2x8x8xf32>, vector<2x8x8xf32>, vector<2x8x8xf32> -> vector<8x8x8xf32>
    %45 = arith.truncf %44 : vector<8x8x8xf32> to vector<8x8x8xbf16>
    %46 = vector.extract_strided_slice %25 {offsets = [0, 0], sizes = [16, 8], strides = [1, 1]} : vector<16x32xf32> to vector<16x8xf32>
    %47 = vector.shape_cast %46 : vector<16x8xf32> to vector<2x8x8xf32>
    %48 = vector.extract_strided_slice %25 {offsets = [0, 8], sizes = [16, 8], strides = [1, 1]} : vector<16x32xf32> to vector<16x8xf32>
    %49 = vector.shape_cast %48 : vector<16x8xf32> to vector<2x8x8xf32>
    %50 = vector.extract_strided_slice %25 {offsets = [0, 16], sizes = [16, 8], strides = [1, 1]} : vector<16x32xf32> to vector<16x8xf32>
    %51 = vector.shape_cast %50 : vector<16x8xf32> to vector<2x8x8xf32>
    %52 = vector.extract_strided_slice %25 {offsets = [0, 24], sizes = [16, 8], strides = [1, 1]} : vector<16x32xf32> to vector<16x8xf32>
    %53 = vector.shape_cast %52 : vector<16x8xf32> to vector<2x8x8xf32>
    %54 = tpu.concatenate %47, %49, %51, %53 in 0 : vector<2x8x8xf32>, vector<2x8x8xf32>, vector<2x8x8xf32>, vector<2x8x8xf32> -> vector<8x8x8xf32>
    %55 = arith.truncf %54 : vector<8x8x8xf32> to vector<8x8x8xbf16>
    "tpu.trace_start"() <{level = 10 : i32, message = "bqd,bkd->bqk"}> : () -> ()
    %cst_22 = arith.constant dense<0.000000e+00> : vector<8x8x8xf32>
    %56 = tpu.matmul %35, %45, %cst_22 {dimension_numbers = #tpu.dot_dimension_numbers<[2], [2], [1], [1], [0, 0, 0, 1, 1, 1], [0], [0]>} : vector<8x8x8xbf16>, vector<8x8x8xbf16>, vector<8x8x8xf32> -> vector<8x8x8xf32>
    "tpu.trace_stop"() : () -> ()
    %c0_23 = arith.constant 0 : index
    %c0_24 = arith.constant 0 : index
    %57 = vector.load %arg1[%c0_23, %c0_24] : memref<8x8xf32, #tpu.memory_space<vmem>>, vector<8x8xf32>
    %58 = vector.shape_cast %57 : vector<8x8xf32> to vector<8x1x8xf32>
    %59 = vector.broadcast %58 : vector<8x1x8xf32> to vector<8x8x8xf32>
    %60 = arith.addf %56, %59 : vector<8x8x8xf32>
    %cst_25 = arith.constant dense<0xFF800000> : vector<8x8xf32>
    %61 = vector.multi_reduction <maximumf>, %60, %cst_25 [2] : vector<8x8x8xf32> to vector<8x8xf32>
    %62 = vector.shape_cast %61 : vector<8x8xf32> to vector<8x8x1xf32>
    %63 = vector.broadcast %62 : vector<8x8x1xf32> to vector<8x8x8xf32>
    %64 = arith.subf %60, %63 : vector<8x8x8xf32>
    %65 = math.exp %64 : vector<8x8x8xf32>
    %cst_26 = arith.constant dense<0.000000e+00> : vector<8x8xf32>
    %66 = vector.multi_reduction <add>, %65, %cst_26 [2] : vector<8x8x8xf32> to vector<8x8xf32>
    %67 = vector.shape_cast %66 : vector<8x8xf32> to vector<8x8x1xf32>
    %68 = tpu.reciprocal %67 : vector<8x8x1xf32> -> vector<8x8x1xf32>
    %69 = vector.broadcast %68 : vector<8x8x1xf32> to vector<8x8x8xf32>
    %70 = arith.mulf %65, %69 : vector<8x8x8xf32>
    %71 = arith.truncf %70 : vector<8x8x8xf32> to vector<8x8x8xbf16>
    "tpu.trace_start"() <{level = 10 : i32, message = "bqk,bkd->bqd"}> : () -> ()
    %cst_27 = arith.constant dense<0.000000e+00> : vector<8x8x8xf32>
    %72 = tpu.matmul %71, %55, %cst_27 {dimension_numbers = #tpu.dot_dimension_numbers<[2], [1], [1], [2], [0, 0, 0, 1, 1, 2], [0], [0]>} : vector<8x8x8xbf16>, vector<8x8x8xbf16>, vector<8x8x8xf32> -> vector<8x8x8xf32>
    "tpu.trace_stop"() : () -> ()
    %73 = vector.extract_strided_slice %72 {offsets = [0, 0, 0], sizes = [2, 8, 8], strides = [1, 1, 1]} : vector<8x8x8xf32> to vector<2x8x8xf32>
    %74 = vector.shape_cast %73 : vector<2x8x8xf32> to vector<16x8xf32>
    %c0_28 = arith.constant 0 : index
    %c0_29 = arith.constant 0 : index
    %75 = vector.load %arg20[%c0_28, %c0_29] : memref<16x32xf32, #tpu.memory_space<vmem>>, vector<16x8xf32>
    tpu.vector_store %arg20[%c0_28, %c0_29], %74 {strides = array<i32>} : memref<16x32xf32, #tpu.memory_space<vmem>>, vector<16x8xf32>,
    %76 = vector.extract_strided_slice %72 {offsets = [2, 0, 0], sizes = [2, 8, 8], strides = [1, 1, 1]} : vector<8x8x8xf32> to vector<2x8x8xf32>
    %77 = vector.shape_cast %76 : vector<2x8x8xf32> to vector<16x8xf32>
    %c0_30 = arith.constant 0 : index
    %c8 = arith.constant 8 : index
    %78 = vector.load %arg20[%c0_30, %c8] : memref<16x32xf32, #tpu.memory_space<vmem>>, vector<16x8xf32>
    tpu.vector_store %arg20[%c0_30, %c8], %77 {strides = array<i32>} : memref<16x32xf32, #tpu.memory_space<vmem>>, vector<16x8xf32>,
    %79 = vector.extract_strided_slice %72 {offsets = [4, 0, 0], sizes = [2, 8, 8], strides = [1, 1, 1]} : vector<8x8x8xf32> to vector<2x8x8xf32>
    %80 = vector.shape_cast %79 : vector<2x8x8xf32> to vector<16x8xf32>
    %c0_31 = arith.constant 0 : index
    %c16 = arith.constant 16 : index
    %81 = vector.load %arg20[%c0_31, %c16] : memref<16x32xf32, #tpu.memory_space<vmem>>, vector<16x8xf32>
    tpu.vector_store %arg20[%c0_31, %c16], %80 {strides = array<i32>} : memref<16x32xf32, #tpu.memory_space<vmem>>, vector<16x8xf32>,
    %82 = vector.extract_strided_slice %72 {offsets = [6, 0, 0], sizes = [2, 8, 8], strides = [1, 1, 1]} : vector<8x8x8xf32> to vector<2x8x8xf32>
    %83 = vector.shape_cast %82 : vector<2x8x8xf32> to vector<16x8xf32>
    %c0_32 = arith.constant 0 : index
    %c24 = arith.constant 24 : index
    %84 = vector.load %arg20[%c0_32, %c24] : memref<16x32xf32, #tpu.memory_space<vmem>>, vector<16x8xf32>
    tpu.vector_store %arg20[%c0_32, %c24], %83 {strides = array<i32>} : memref<16x32xf32, #tpu.memory_space<vmem>>, vector<16x8xf32>,
    %c0_33 = arith.constant 0 : index
    %c0_34 = arith.constant 0 : index
    %85 = vector.load %arg20[%c0_33, %c0_34] : memref<16x32xf32, #tpu.memory_space<vmem>>, vector<16x32xf32>
    %86 = arith.truncf %85 : vector<16x32xf32> to vector<16x32xbf16>
    %c0_35 = arith.constant 0 : index
    %c0_36 = arith.constant 0 : index
    %c0_37 = arith.constant 0 : index
    %87 = vector.load %arg9[%c0_35, %c0_36, %c0_37] : memref<1x32x32xbf16, #tpu.memory_space<vmem>>, vector<1x32x32xbf16>
    %88 = vector.shape_cast %87 : vector<1x32x32xbf16> to vector<32x32xbf16>
    %cst_38 = arith.constant dense<0.000000e+00> : vector<16x32xf32>
    %89 = tpu.matmul %86, %88, %cst_38 {dimension_numbers = #tpu.dot_dimension_numbers<[1], [0], [0], [1], [0, 0, 1, 1], [], []>} : vector<16x32xbf16>, vector<32x32xbf16>, vector<16x32xf32> -> vector<16x32xf32>
    %c0_39 = arith.constant 0 : index
    %c0_40 = arith.constant 0 : index
    %c0_41 = arith.constant 0 : index
    %90 = vector.load %arg10[%c0_39, %c0_40, %c0_41] : memref<1x1x32xf32, #tpu.memory_space<vmem>>, vector<1x1x32xf32>
    %91 = vector.shape_cast %90 : vector<1x1x32xf32> to vector<1x32xf32>
    %92 = vector.broadcast %91 : vector<1x32xf32> to vector<16x32xf32>
    %93 = arith.addf %89, %92 : vector<16x32xf32>
    %94 = arith.addf %93, %3 : vector<16x32xf32>
    %c0_42 = arith.constant 0 : index
    %c0_43 = arith.constant 0 : index
    %c0_44 = arith.constant 0 : index
    %95 = vector.load %arg11[%c0_42, %c0_43, %c0_44] : memref<1x1x32xf32, #tpu.memory_space<vmem>>, vector<1x1x32xf32>
    %96 = vector.shape_cast %95 : vector<1x1x32xf32> to vector<1x32xf32>
    %c0_45 = arith.constant 0 : index
    %c0_46 = arith.constant 0 : index
    %c0_47 = arith.constant 0 : index
    %97 = vector.load %arg12[%c0_45, %c0_46, %c0_47] : memref<1x1x32xf32, #tpu.memory_space<vmem>>, vector<1x1x32xf32>
    %98 = vector.shape_cast %97 : vector<1x1x32xf32> to vector<1x32xf32>
    %cst_48 = arith.constant dense<0.000000e+00> : vector<16xf32>
    %99 = vector.multi_reduction <add>, %94, %cst_48 [1] : vector<16x32xf32> to vector<16xf32>
    %100 = vector.shape_cast %99 : vector<16xf32> to vector<16x1xf32>
    %cst_49 = arith.constant 3.200000e+01 : f32
    %101 = vector.broadcast %cst_49 : f32 to vector<16x1xf32>
    %102 = arith.divf %100, %101 : vector<16x1xf32>
    %103 = vector.broadcast %102 : vector<16x1xf32> to vector<16x32xf32>
    %104 = arith.subf %94, %103 : vector<16x32xf32>
    %105 = arith.mulf %104, %104 : vector<16x32xf32>
    %cst_50 = arith.constant dense<0.000000e+00> : vector<16xf32>
    %106 = vector.multi_reduction <add>, %105, %cst_50 [1] : vector<16x32xf32> to vector<16xf32>
    %107 = vector.shape_cast %106 : vector<16xf32> to vector<16x1xf32>
    %cst_51 = arith.constant 3.200000e+01 : f32
    %108 = vector.broadcast %cst_51 : f32 to vector<16x1xf32>
    %109 = arith.divf %107, %108 : vector<16x1xf32>
    %cst_52 = arith.constant 9.99999996E-13 : f32
    %110 = vector.broadcast %cst_52 : f32 to vector<16x1xf32>
    %111 = arith.addf %109, %110 : vector<16x1xf32>
    %112 = math.rsqrt %111 : vector<16x1xf32>
    %113 = vector.broadcast %112 : vector<16x1xf32> to vector<16x32xf32>
    %114 = arith.mulf %104, %113 : vector<16x32xf32>
    %115 = vector.broadcast %96 : vector<1x32xf32> to vector<16x32xf32>
    %116 = arith.mulf %114, %115 : vector<16x32xf32>
    %117 = vector.broadcast %98 : vector<1x32xf32> to vector<16x32xf32>
    %118 = arith.addf %116, %117 : vector<16x32xf32>
    %119 = arith.truncf %118 : vector<16x32xf32> to vector<16x32xbf16>
    %c0_53 = arith.constant 0 : index
    %c0_54 = arith.constant 0 : index
    %c0_55 = arith.constant 0 : index
    %120 = vector.load %arg13[%c0_53, %c0_54, %c0_55] : memref<1x32x64xbf16, #tpu.memory_space<vmem>>, vector<1x32x64xbf16>
    %121 = vector.shape_cast %120 : vector<1x32x64xbf16> to vector<32x64xbf16>
    %cst_56 = arith.constant dense<0.000000e+00> : vector<16x64xf32>
    %122 = tpu.matmul %119, %121, %cst_56 {dimension_numbers = #tpu.dot_dimension_numbers<[1], [0], [0], [1], [0, 0, 1, 1], [], []>} : vector<16x32xbf16>, vector<32x64xbf16>, vector<16x64xf32> -> vector<16x64xf32>
    %c0_57 = arith.constant 0 : index
    %c0_58 = arith.constant 0 : index
    %c0_59 = arith.constant 0 : index
    %123 = vector.load %arg14[%c0_57, %c0_58, %c0_59] : memref<1x1x64xf32, #tpu.memory_space<vmem>>, vector<1x1x64xf32>
    %124 = vector.shape_cast %123 : vector<1x1x64xf32> to vector<1x64xf32>
    %125 = vector.broadcast %124 : vector<1x64xf32> to vector<16x64xf32>
    %126 = arith.addf %122, %125 : vector<16x64xf32>
    %cst_60 = arith.constant 5.000000e-01 : f32
    %127 = vector.broadcast %cst_60 : f32 to vector<16x64xf32>
    %128 = arith.mulf %126, %127 : vector<16x64xf32>
    %cst_61 = arith.constant 0.707106769 : f32
    %129 = vector.broadcast %cst_61 : f32 to vector<16x64xf32>
    %130 = arith.mulf %126, %129 : vector<16x64xf32>
    %131 = math.erf %130 : vector<16x64xf32>
    %cst_62 = arith.constant 1.000000e+00 : f32
    %132 = vector.broadcast %cst_62 : f32 to vector<16x64xf32>
    %133 = arith.addf %132, %131 : vector<16x64xf32>
    %134 = arith.mulf %128, %133 : vector<16x64xf32>
    %135 = arith.truncf %134 : vector<16x64xf32> to vector<16x64xbf16>
    %c0_63 = arith.constant 0 : index
    %c0_64 = arith.constant 0 : index
    %c0_65 = arith.constant 0 : index
    %136 = vector.load %arg15[%c0_63, %c0_64, %c0_65] : memref<1x64x32xbf16, #tpu.memory_space<vmem>>, vector<1x64x32xbf16>
    %137 = vector.shape_cast %136 : vector<1x64x32xbf16> to vector<64x32xbf16>
    %cst_66 = arith.constant dense<0.000000e+00> : vector<16x32xf32>
    %138 = tpu.matmul %135, %137, %cst_66 {dimension_numbers = #tpu.dot_dimension_numbers<[1], [0], [0], [1], [0, 0, 1, 1], [], []>} : vector<16x64xbf16>, vector<64x32xbf16>, vector<16x32xf32> -> vector<16x32xf32>
    %c0_67 = arith.constant 0 : index
    %c0_68 = arith.constant 0 : index
    %c0_69 = arith.constant 0 : index
    %139 = vector.load %arg16[%c0_67, %c0_68, %c0_69] : memref<1x1x32xf32, #tpu.memory_space<vmem>>, vector<1x1x32xf32>
    %140 = vector.shape_cast %139 : vector<1x1x32xf32> to vector<1x32xf32>
    %141 = vector.broadcast %140 : vector<1x32xf32> to vector<16x32xf32>
    %142 = arith.addf %138, %141 : vector<16x32xf32>
    %143 = arith.addf %142, %118 : vector<16x32xf32>
    %c0_70 = arith.constant 0 : index
    %c0_71 = arith.constant 0 : index
    %c0_72 = arith.constant 0 : index
    %144 = vector.load %arg17[%c0_70, %c0_71, %c0_72] : memref<1x1x32xf32, #tpu.memory_space<vmem>>, vector<1x1x32xf32>
    %145 = vector.shape_cast %144 : vector<1x1x32xf32> to vector<1x32xf32>
    %c0_73 = arith.constant 0 : index
    %c0_74 = arith.constant 0 : index
    %c0_75 = arith.constant 0 : index
    %146 = vector.load %arg18[%c0_73, %c0_74, %c0_75] : memref<1x1x32xf32, #tpu.memory_space<vmem>>, vector<1x1x32xf32>
    %147 = vector.shape_cast %146 : vector<1x1x32xf32> to vector<1x32xf32>
    %cst_76 = arith.constant dense<0.000000e+00> : vector<16xf32>
    %148 = vector.multi_reduction <add>, %143, %cst_76 [1] : vector<16x32xf32> to vector<16xf32>
    %149 = vector.shape_cast %148 : vector<16xf32> to vector<16x1xf32>
    %cst_77 = arith.constant 3.200000e+01 : f32
    %150 = vector.broadcast %cst_77 : f32 to vector<16x1xf32>
    %151 = arith.divf %149, %150 : vector<16x1xf32>
    %152 = vector.broadcast %151 : vector<16x1xf32> to vector<16x32xf32>
    %153 = arith.subf %143, %152 : vector<16x32xf32>
    %154 = arith.mulf %153, %153 : vector<16x32xf32>
    %cst_78 = arith.constant dense<0.000000e+00> : vector<16xf32>
    %155 = vector.multi_reduction <add>, %154, %cst_78 [1] : vector<16x32xf32> to vector<16xf32>
    %156 = vector.shape_cast %155 : vector<16xf32> to vector<16x1xf32>
    %cst_79 = arith.constant 3.200000e+01 : f32
    %157 = vector.broadcast %cst_79 : f32 to vector<16x1xf32>
    %158 = arith.divf %156, %157 : vector<16x1xf32>
    %cst_80 = arith.constant 9.99999996E-13 : f32
    %159 = vector.broadcast %cst_80 : f32 to vector<16x1xf32>
    %160 = arith.addf %158, %159 : vector<16x1xf32>
    %161 = math.rsqrt %160 : vector<16x1xf32>
    %162 = vector.broadcast %161 : vector<16x1xf32> to vector<16x32xf32>
    %163 = arith.mulf %153, %162 : vector<16x32xf32>
    %164 = vector.broadcast %145 : vector<1x32xf32> to vector<16x32xf32>
    %165 = arith.mulf %163, %164 : vector<16x32xf32>
    %166 = vector.broadcast %147 : vector<1x32xf32> to vector<16x32xf32>
    %167 = arith.addf %165, %166 : vector<16x32xf32>
    %c0_81 = arith.constant 0 : index
    %c0_82 = arith.constant 0 : index
    %168 = vector.load %arg19[%c0_81, %c0_82] : memref<16x32xf32, #tpu.memory_space<vmem>>, vector<16x32xf32>
    tpu.vector_store %arg19[%c0_81, %c0_82], %167 {strides = array<i32>} : memref<16x32xf32, #tpu.memory_space<vmem>>, vector<16x32xf32>,
    return
  }
  func.func @transform_0(%arg0: i32) -> (i32, i32) {
    %c0_i32 = arith.constant 0 : i32
    %c0_i32_0 = arith.constant 0 : i32
    %c0_i32_1 = arith.constant 0 : i32
    return %c0_i32, %c0_i32_0 : i32, i32
  }
  func.func @transform_1(%arg0: i32) -> (i32, i32) {
    %c0_i32 = arith.constant 0 : i32
    %c0_i32_0 = arith.constant 0 : i32
    %c0_i32_1 = arith.constant 0 : i32
    return %c0_i32, %c0_i32_0 : i32, i32
  }
  func.func @transform_2(%arg0: i32) -> (i32, i32, i32) {
    %c0_i32 = arith.constant 0 : i32
    %c0_i32_0 = arith.constant 0 : i32
    %c0_i32_1 = arith.constant 0 : i32
    return %arg0, %c0_i32, %c0_i32_0 : i32, i32, i32
  }
  func.func @transform_3(%arg0: i32) -> (i32, i32, i32) {
    %c0_i32 = arith.constant 0 : i32
    %c0_i32_0 = arith.constant 0 : i32
    %c0_i32_1 = arith.constant 0 : i32
    return %arg0, %c0_i32, %c0_i32_0 : i32, i32, i32
  }
  func.func @transform_4(%arg0: i32) -> (i32, i32, i32) {
    %c0_i32 = arith.constant 0 : i32
    %c0_i32_0 = arith.constant 0 : i32
    %c0_i32_1 = arith.constant 0 : i32
    return %arg0, %c0_i32, %c0_i32_0 : i32, i32, i32
  }
  func.func @transform_5(%arg0: i32) -> (i32, i32, i32) {
    %c0_i32 = arith.constant 0 : i32
    %c0_i32_0 = arith.constant 0 : i32
    %c0_i32_1 = arith.constant 0 : i32
    return %arg0, %c0_i32, %c0_i32_0 : i32, i32, i32
  }
  func.func @transform_6(%arg0: i32) -> (i32, i32, i32) {
    %c0_i32 = arith.constant 0 : i32
    %c0_i32_0 = arith.constant 0 : i32
    %c0_i32_1 = arith.constant 0 : i32
    return %arg0, %c0_i32, %c0_i32_0 : i32, i32, i32
  }
  func.func @transform_7(%arg0: i32) -> (i32, i32, i32) {
    %c0_i32 = arith.constant 0 : i32
    %c0_i32_0 = arith.constant 0 : i32
    %c0_i32_1 = arith.constant 0 : i32
    return %arg0, %c0_i32, %c0_i32_0 : i32, i32, i32
  }
  func.func @transform_8(%arg0: i32) -> (i32, i32, i32) {
    %c0_i32 = arith.constant 0 : i32
    %c0_i32_0 = arith.constant 0 : i32
    %c0_i32_1 = arith.constant 0 : i32
    return %arg0, %c0_i32, %c0_i32_0 : i32, i32, i32
  }
  func.func @transform_9(%arg0: i32) -> (i32, i32, i32) {
    %c0_i32 = arith.constant 0 : i32
    %c0_i32_0 = arith.constant 0 : i32
    %c0_i32_1 = arith.constant 0 : i32
    return %arg0, %c0_i32, %c0_i32_0 : i32, i32, i32
  }
  func.func @transform_10(%arg0: i32) -> (i32, i32, i32) {
    %c0_i32 = arith.constant 0 : i32
    %c0_i32_0 = arith.constant 0 : i32
    %c0_i32_1 = arith.constant 0 : i32
    return %arg0, %c0_i32, %c0_i32_0 : i32, i32, i32
  }
  func.func @transform_11(%arg0: i32) -> (i32, i32, i32) {
    %c0_i32 = arith.constant 0 : i32
    %c0_i32_0 = arith.constant 0 : i32
    %c0_i32_1 = arith.constant 0 : i32
    return %arg0, %c0_i32, %c0_i32_0 : i32, i32, i32
  }
  func.func @transform_12(%arg0: i32) -> (i32, i32, i32) {
    %c0_i32 = arith.constant 0 : i32
    %c0_i32_0 = arith.constant 0 : i32
    %c0_i32_1 = arith.constant 0 : i32
    return %arg0, %c0_i32, %c0_i32_0 : i32, i32, i32
  }
  func.func @transform_13(%arg0: i32) -> (i32, i32, i32) {
    %c0_i32 = arith.constant 0 : i32
    %c0_i32_0 = arith.constant 0 : i32
    %c0_i32_1 = arith.constant 0 : i32
    return %arg0, %c0_i32, %c0_i32_0 : i32, i32, i32
  }
  func.func @transform_14(%arg0: i32) -> (i32, i32, i32) {
    %c0_i32 = arith.constant 0 : i32
    %c0_i32_0 = arith.constant 0 : i32
    %c0_i32_1 = arith.constant 0 : i32
    return %arg0, %c0_i32, %c0_i32_0 : i32, i32, i32
  }
  func.func @transform_15(%arg0: i32) -> (i32, i32, i32) {
    %c0_i32 = arith.constant 0 : i32
    %c0_i32_0 = arith.constant 0 : i32
    %c0_i32_1 = arith.constant 0 : i32
    return %arg0, %c0_i32, %c0_i32_0 : i32, i32, i32
  }
  func.func @transform_16(%arg0: i32) -> (i32, i32, i32) {
    %c0_i32 = arith.constant 0 : i32
    %c0_i32_0 = arith.constant 0 : i32
    %c0_i32_1 = arith.constant 0 : i32
    return %arg0, %c0_i32, %c0_i32_0 : i32, i32, i32
  }
  func.func @transform_17(%arg0: i32) -> (i32, i32, i32) {
    %c0_i32 = arith.constant 0 : i32
    %c0_i32_0 = arith.constant 0 : i32
    %c0_i32_1 = arith.constant 0 : i32
    return %arg0, %c0_i32, %c0_i32_0 : i32, i32, i32
  }
  func.func @transform_18(%arg0: i32) -> (i32, i32) {
    %c0_i32 = arith.constant 0 : i32
    %c0_i32_0 = arith.constant 0 : i32
    %c0_i32_1 = arith.constant 0 : i32
    return %c0_i32, %c0_i32_0 : i32, i32
  }
}

</mosaic_0001>

<llo_original>
// kernel: tpu_custom_call.1
$region0: #{tpu_custom_call.1}
  #allocation0 [shape = 'u32[]', space=smem, size = 0x4, offset = 0x4, fixed_abs, tag = 'smem constant byte address 0x4 - core index']
  #allocation1 [shape = 'u32[72,128]{1,0:T(1,128)}', space=vmem, size = 0x9000, scoped, tag = 'internal scratch']
  #allocation2 [shape = 'f32[16,32]{1,0:T(8,128)}', space=vmem, size = 0x2000, scoped, tag = 'scratch operand']
  %s0 = inlined_call_operand.hbm [shape: f32[8,8], index: 0, kind: input, shape index: {}]
  %s1 = inlined_call_operand.hbm [shape: f32[16,32], index: 1, kind: input, shape index: {}]
  %s2 = inlined_call_operand.vmem [shape: bf16[2,32,32], index: 2, kind: input, shape index: {}]
  %s3 = inlined_call_operand.hbm [shape: f32[2,1,32], index: 3, kind: input, shape index: {}]
  %s4 = inlined_call_operand.vmem [shape: bf16[2,32,32], index: 4, kind: input, shape index: {}]
  %s5 = inlined_call_operand.vmem [shape: f32[2,1,32], index: 5, kind: input, shape index: {}]
  %s6 = inlined_call_operand.vmem [shape: bf16[2,32,32], index: 6, kind: input, shape index: {}]
  %s7 = inlined_call_operand.vmem [shape: f32[2,1,32], index: 7, kind: input, shape index: {}]
  %s8 = inlined_call_operand.hbm [shape: bf16[2,32,32], index: 8, kind: input, shape index: {}]
  %s9 = inlined_call_operand.vmem [shape: f32[2,1,32], index: 9, kind: input, shape index: {}]
  %s10 = inlined_call_operand.vmem [shape: f32[2,1,32], index: 10, kind: input, shape index: {}]
  %s11 = inlined_call_operand.hbm [shape: f32[2,1,32], index: 11, kind: input, shape index: {}]
  %s12 = inlined_call_operand.hbm [shape: bf16[2,32,64], index: 12, kind: input, shape index: {}]
  %s13 = inlined_call_operand.vmem [shape: f32[2,1,64], index: 13, kind: input, shape index: {}]
  %s14 = inlined_call_operand.vmem [shape: bf16[2,64,32], index: 14, kind: input, shape index: {}]
  %s15 = inlined_call_operand.vmem [shape: f32[2,1,32], index: 15, kind: input, shape index: {}]
  %s16 = inlined_call_operand.vmem [shape: f32[2,1,32], index: 16, kind: input, shape index: {}]
  %s17 = inlined_call_operand.hbm [shape: f32[2,1,32], index: 17, kind: input, shape index: {}]
  %s18 = inlined_call_operand.hbm [shape: f32[16,32], index: 18, kind: output, shape index: {}]
  %s19 = sld [smem:[#allocation0]]
  $region137: #{tpu_custom_call.1} parent=0
    _
  %s21 = ssub.s32 1, %s19
  %s22 = scalar_select 0, %s21, %s19
  $region1: #{tpu_custom_call.1} parent=0
    #allocation3 [shape = 'u8[4096]{0}', space=vmem, size = 0x1000, scoped, tag = 'input window, operand 0, single buffered']
    #allocation4 [shape = 's32[2]{0}', space=sflag, size = 0x8, scoped, tag = 'scoped memory for tpu_custom_call.1']
    #allocation5 [shape = 's32[2]{0}', space=sflag, size = 0x8, scoped, tag = 'scoped memory for tpu_custom_call.1']
    #allocation6 [shape = 'u8[8192]{0}', space=vmem, size = 0x2000, scoped, tag = 'input window, operand 1, single buffered']
    #allocation7 [shape = 's32[1]{0}', space=sflag, size = 0x4, scoped, tag = 'scoped memory for tpu_custom_call.1']
    #allocation8 [shape = 'u8[1024]{0}', space=vmem, size = 0x400, scoped, tag = 'input window, operand 3']
    #allocation9 [shape = 'u8[16384]{0}', space=vmem, size = 0x4000, scoped, tag = 'input window, operand 8']
    #allocation10 [shape = 'u8[1024]{0}', space=vmem, size = 0x400, scoped, tag = 'input window, operand 11']
    #allocation11 [shape = 'u8[16384]{0}', space=vmem, size = 0x4000, scoped, tag = 'input window, operand 12']
    #allocation12 [shape = 'u8[1024]{0}', space=vmem, size = 0x400, scoped, tag = 'input window, operand 17']
    #allocation13 [shape = 'u8[8192]{0}', space=vmem, size = 0x2000, scoped, tag = 'output window, operand 0, single buffered']
    %23 = vsyncpa [#allocation4], 0
    %24 = vsyncpa [#allocation7], 0
    %25 = vsyncpa [#allocation5], 0
    loop: start=0, step=1, limit=4
    $region2: #{tpu_custom_call.1} parent=1 // loop_pre_header
      _
    $region3: #{tpu_custom_call.1} parent=1 // loop_header
      %s27 = sphi 0, %s31
      %p28 = scmp.ge.s32.totalorder %s27, 4
      %s35 = sphi 0, %s35
      %s37 = sphi 0, %s35
      %s38 = sphi 0, %s37
      %s52 = sphi 0, %s38
      %s56 = sphi 0, %s56
      %s58 = sphi 0, %s56
      %s59 = sphi 0, %s58
      %s73 = sphi 0, %s59
      %s79 = sphi 0, %s81
      %s82 = sphi 0, %s79
      %s83 = sphi 0, %s82
      %s99 = sphi 0, %s83
      %s105 = sphi 0, %s107
      %s108 = sphi 0, %s105
      %s109 = sphi 0, %s108
      %s125 = sphi 0, %s109
      %s131 = sphi 0, %s133
      %s134 = sphi 0, %s131
      %s135 = sphi 0, %s134
      %s151 = sphi 0, %s135
      %s157 = sphi 0, %s159
      %s160 = sphi 0, %s157
      %s161 = sphi 0, %s160
      %s177 = sphi 0, %s161
      %s183 = sphi 0, %s185
      %s186 = sphi 0, %s183
      %s187 = sphi 0, %s186
      %s203 = sphi 0, %s187
      %s209 = sphi 0, %s211
      %s212 = sphi 0, %s209
      %s213 = sphi 0, %s212
      %s229 = sphi 0, %s213
      %s235 = sphi 0, %s237
      %s238 = sphi 0, %s235
      %s239 = sphi 0, %s238
      %s255 = sphi 0, %s239
      %s261 = sphi 0, %s263
      %s264 = sphi 0, %s261
      %s265 = sphi 0, %s264
      %s281 = sphi 0, %s265
      %s287 = sphi 0, %s289
      %s290 = sphi 0, %s287
      %s291 = sphi 0, %s290
      %s307 = sphi 0, %s291
      %s313 = sphi 0, %s315
      %s316 = sphi 0, %s313
      %s317 = sphi 0, %s316
      %s333 = sphi 0, %s317
      %s339 = sphi 0, %s341
      %s342 = sphi 0, %s339
      %s343 = sphi 0, %s342
      %s359 = sphi 0, %s343
      %s365 = sphi 0, %s367
      %s368 = sphi 0, %s365
      %s369 = sphi 0, %s368
      %s385 = sphi 0, %s369
      %s391 = sphi 0, %s393
      %s394 = sphi 0, %s391
      %s395 = sphi 0, %s394
      %s411 = sphi 0, %s395
      %s417 = sphi 0, %s419
      %s420 = sphi 0, %s417
      %s421 = sphi 0, %s420
      %s437 = sphi 0, %s421
      %s443 = sphi 0, %s445
      %s446 = sphi 0, %s443
      %s447 = sphi 0, %s446
      %s463 = sphi 0, %s447
      %s469 = sphi 0, %s471
      %s472 = sphi 0, %s469
      %s473 = sphi 0, %s472
      %s489 = sphi 0, %s473
      %s493 = sphi 0, %s493
      %s495 = sphi 0, %s493
      %s496 = sphi 0, %s495
      %s510 = sphi 0, %s496
    $region4: #{tpu_custom_call.1} parent=1 // loop_header_branch
      %30 = sbr.rel (%p28) target = $region8
    $region5: #{tpu_custom_call.1} parent=1 // loop_body
      %s32 = ssub.s32 %s27, 1
      %s33 = ssub.s32 %s27, 2
      %s34 = sadd.s32 %s27, 1
      %s36 = sadd.s32 %s35, 1
      %p39 = scmp.eq.s32.totalorder %s27, 1
      %p40 = scmp.ne.s32.totalorder %s35, %s37
      %p41 = scmp.eq.s32.totalorder %s27, 0
      %p42 = por %p40, %p41
      %p43 = scmp.ne.s32.totalorder %s35, %s37
      %p44 = scmp.eq.s32.totalorder %s32, 1
      %p45 = por %p43, %p44
      %p46 = scmp.ne.s32.totalorder %s37, %s38
      %p47 = scmp.eq.s32.totalorder %s32, 0
      %p48 = por %p46, %p47
      %p49 = scmp.ne.s32.totalorder %s37, %s38
      %p50 = scmp.eq.s32.totalorder %s33, 1
      %p51 = por %p49, %p50
      %p53 = scmp.ne.s32.totalorder %s38, %s52
      %p54 = scmp.eq.s32.totalorder %s33, 0
      %p55 = por %p53, %p54
      %s57 = sadd.s32 %s56, 1
      %p60 = scmp.eq.s32.totalorder %s27, 1
      %p61 = scmp.ne.s32.totalorder %s56, %s58
      %p62 = scmp.eq.s32.totalorder %s27, 0
      %p63 = por %p61, %p62
      %p64 = scmp.ne.s32.totalorder %s56, %s58
      %p65 = scmp.eq.s32.totalorder %s32, 1
      %p66 = por %p64, %p65
      %p67 = scmp.ne.s32.totalorder %s58, %s59
      %p68 = scmp.eq.s32.totalorder %s32, 0
      %p69 = por %p67, %p68
      %p70 = scmp.ne.s32.totalorder %s58, %s59
      %p71 = scmp.eq.s32.totalorder %s33, 1
      %p72 = por %p70, %p71
      %p74 = scmp.ne.s32.totalorder %s59, %s73
      %p75 = scmp.eq.s32.totalorder %s33, 0
      %p76 = por %p74, %p75
      %s77 = ssub.s32 %s27, %s34
      %p78 = scmp.eq.s32.totalorder %s77, 0
      %s80 = sadd.s32 %s79, 1
      %s81 = scalar_select %p78, %s79, %s80
      %p84 = pneg %p78
      %p85 = scmp.eq.s32.totalorder %s27, 1
      %p86 = por %p84, %p85
      %p87 = scmp.ne.s32.totalorder %s79, %s82
      %p88 = scmp.eq.s32.totalorder %s27, 0
      %p89 = por %p87, %p88
      %p90 = scmp.ne.s32.totalorder %s79, %s82
      %p91 = scmp.eq.s32.totalorder %s32, 1
      %p92 = por %p90, %p91
      %p93 = scmp.ne.s32.totalorder %s82, %s83
      %p94 = scmp.eq.s32.totalorder %s32, 0
      %p95 = por %p93, %p94
      %p96 = scmp.ne.s32.totalorder %s82, %s83
      %p97 = scmp.eq.s32.totalorder %s33, 1
      %p98 = por %p96, %p97
      %p100 = scmp.ne.s32.totalorder %s83, %s99
      %p101 = scmp.eq.s32.totalorder %s33, 0
      %p102 = por %p100, %p101
      %s103 = ssub.s32 %s27, %s34
      %p104 = scmp.eq.s32.totalorder %s103, 0
      %s106 = sadd.s32 %s105, 1
      %s107 = scalar_select %p104, %s105, %s106
      %p110 = pneg %p104
      %p111 = scmp.eq.s32.totalorder %s27, 1
      %p112 = por %p110, %p111
      %p113 = scmp.ne.s32.totalorder %s105, %s108
      %p114 = scmp.eq.s32.totalorder %s27, 0
      %p115 = por %p113, %p114
      %p116 = scmp.ne.s32.totalorder %s105, %s108
      %p117 = scmp.eq.s32.totalorder %s32, 1
      %p118 = por %p116, %p117
      %p119 = scmp.ne.s32.totalorder %s108, %s109
      %p120 = scmp.eq.s32.totalorder %s32, 0
      %p121 = por %p119, %p120
      %p122 = scmp.ne.s32.totalorder %s108, %s109
      %p123 = scmp.eq.s32.totalorder %s33, 1
      %p124 = por %p122, %p123
      %p126 = scmp.ne.s32.totalorder %s109, %s125
      %p127 = scmp.eq.s32.totalorder %s33, 0
      %p128 = por %p126, %p127
      %s129 = ssub.s32 %s27, %s34
      %p130 = scmp.eq.s32.totalorder %s129, 0
      %s132 = sadd.s32 %s131, 1
      %s133 = scalar_select %p130, %s131, %s132
      %p136 = pneg %p130
      %p137 = scmp.eq.s32.totalorder %s27, 1
      %p138 = por %p136, %p137
      %p139 = scmp.ne.s32.totalorder %s131, %s134
      %p140 = scmp.eq.s32.totalorder %s27, 0
      %p141 = por %p139, %p140
      %p142 = scmp.ne.s32.totalorder %s131, %s134
      %p143 = scmp.eq.s32.totalorder %s32, 1
      %p144 = por %p142, %p143
      %p145 = scmp.ne.s32.totalorder %s134, %s135
      %p146 = scmp.eq.s32.totalorder %s32, 0
      %p147 = por %p145, %p146
      %p148 = scmp.ne.s32.totalorder %s134, %s135
      %p149 = scmp.eq.s32.totalorder %s33, 1
      %p150 = por %p148, %p149
      %p152 = scmp.ne.s32.totalorder %s135, %s151
      %p153 = scmp.eq.s32.totalorder %s33, 0
      %p154 = por %p152, %p153
      %s155 = ssub.s32 %s27, %s34
      %p156 = scmp.eq.s32.totalorder %s155, 0
      %s158 = sadd.s32 %s157, 1
      %s159 = scalar_select %p156, %s157, %s158
      %p162 = pneg %p156
      %p163 = scmp.eq.s32.totalorder %s27, 1
      %p164 = por %p162, %p163
      %p165 = scmp.ne.s32.totalorder %s157, %s160
      %p166 = scmp.eq.s32.totalorder %s27, 0
      %p167 = por %p165, %p166
      %p168 = scmp.ne.s32.totalorder %s157, %s160
      %p169 = scmp.eq.s32.totalorder %s32, 1
      %p170 = por %p168, %p169
      %p171 = scmp.ne.s32.totalorder %s160, %s161
      %p172 = scmp.eq.s32.totalorder %s32, 0
      %p173 = por %p171, %p172
      %p174 = scmp.ne.s32.totalorder %s160, %s161
      %p175 = scmp.eq.s32.totalorder %s33, 1
      %p176 = por %p174, %p175
      %p178 = scmp.ne.s32.totalorder %s161, %s177
      %p179 = scmp.eq.s32.totalorder %s33, 0
      %p180 = por %p178, %p179
      %s181 = ssub.s32 %s27, %s34
      %p182 = scmp.eq.s32.totalorder %s181, 0
      %s184 = sadd.s32 %s183, 1
      %s185 = scalar_select %p182, %s183, %s184
      %p188 = pneg %p182
      %p189 = scmp.eq.s32.totalorder %s27, 1
      %p190 = por %p188, %p189
      %p191 = scmp.ne.s32.totalorder %s183, %s186
      %p192 = scmp.eq.s32.totalorder %s27, 0
      %p193 = por %p191, %p192
      %p194 = scmp.ne.s32.totalorder %s183, %s186
      %p195 = scmp.eq.s32.totalorder %s32, 1
      %p196 = por %p194, %p195
      %p197 = scmp.ne.s32.totalorder %s186, %s187
      %p198 = scmp.eq.s32.totalorder %s32, 0
      %p199 = por %p197, %p198
      %p200 = scmp.ne.s32.totalorder %s186, %s187
      %p201 = scmp.eq.s32.totalorder %s33, 1
      %p202 = por %p200, %p201
      %p204 = scmp.ne.s32.totalorder %s187, %s203
      %p205 = scmp.eq.s32.totalorder %s33, 0
      %p206 = por %p204, %p205
      %s207 = ssub.s32 %s27, %s34
      %p208 = scmp.eq.s32.totalorder %s207, 0
      %s210 = sadd.s32 %s209, 1
      %s211 = scalar_select %p208, %s209, %s210
      %p214 = pneg %p208
      %p215 = scmp.eq.s32.totalorder %s27, 1
      %p216 = por %p214, %p215
      %p217 = scmp.ne.s32.totalorder %s209, %s212
      %p218 = scmp.eq.s32.totalorder %s27, 0
      %p219 = por %p217, %p218
      %p220 = scmp.ne.s32.totalorder %s209, %s212
      %p221 = scmp.eq.s32.totalorder %s32, 1
      %p222 = por %p220, %p221
      %p223 = scmp.ne.s32.totalorder %s212, %s213
      %p224 = scmp.eq.s32.totalorder %s32, 0
      %p225 = por %p223, %p224
      %p226 = scmp.ne.s32.totalorder %s212, %s213
      %p227 = scmp.eq.s32.totalorder %s33, 1
      %p228 = por %p226, %p227
      %p230 = scmp.ne.s32.totalorder %s213, %s229
      %p231 = scmp.eq.s32.totalorder %s33, 0
      %p232 = por %p230, %p231
      %s233 = ssub.s32 %s27, %s34
      %p234 = scmp.eq.s32.totalorder %s233, 0
      %s236 = sadd.s32 %s235, 1
      %s237 = scalar_select %p234, %s235, %s236
      %p240 = pneg %p234
      %p241 = scmp.eq.s32.totalorder %s27, 1
      %p242 = por %p240, %p241
      %p243 = scmp.ne.s32.totalorder %s235, %s238
      %p244 = scmp.eq.s32.totalorder %s27, 0
      %p245 = por %p243, %p244
      %p246 = scmp.ne.s32.totalorder %s235, %s238
      %p247 = scmp.eq.s32.totalorder %s32, 1
      %p248 = por %p246, %p247
      %p249 = scmp.ne.s32.totalorder %s238, %s239
      %p250 = scmp.eq.s32.totalorder %s32, 0
      %p251 = por %p249, %p250
      %p252 = scmp.ne.s32.totalorder %s238, %s239
      %p253 = scmp.eq.s32.totalorder %s33, 1
      %p254 = por %p252, %p253
      %p256 = scmp.ne.s32.totalorder %s239, %s255
      %p257 = scmp.eq.s32.totalorder %s33, 0
      %p258 = por %p256, %p257
      %s259 = ssub.s32 %s27, %s34
      %p260 = scmp.eq.s32.totalorder %s259, 0
      %s262 = sadd.s32 %s261, 1
      %s263 = scalar_select %p260, %s261, %s262
      %p266 = pneg %p260
      %p267 = scmp.eq.s32.totalorder %s27, 1
      %p268 = por %p266, %p267
      %p269 = scmp.ne.s32.totalorder %s261, %s264
      %p270 = scmp.eq.s32.totalorder %s27, 0
      %p271 = por %p269, %p270
      %p272 = scmp.ne.s32.totalorder %s261, %s264
      %p273 = scmp.eq.s32.totalorder %s32, 1
      %p274 = por %p272, %p273
      %p275 = scmp.ne.s32.totalorder %s264, %s265
      %p276 = scmp.eq.s32.totalorder %s32, 0
      %p277 = por %p275, %p276
      %p278 = scmp.ne.s32.totalorder %s264, %s265
      %p279 = scmp.eq.s32.totalorder %s33, 1
      %p280 = por %p278, %p279
      %p282 = scmp.ne.s32.totalorder %s265, %s281
      %p283 = scmp.eq.s32.totalorder %s33, 0
      %p284 = por %p282, %p283
      %s285 = ssub.s32 %s27, %s34
      %p286 = scmp.eq.s32.totalorder %s285, 0
      %s288 = sadd.s32 %s287, 1
      %s289 = scalar_select %p286, %s287, %s288
      %p292 = pneg %p286
      %p293 = scmp.eq.s32.totalorder %s27, 1
      %p294 = por %p292, %p293
      %p295 = scmp.ne.s32.totalorder %s287, %s290
      %p296 = scmp.eq.s32.totalorder %s27, 0
      %p297 = por %p295, %p296
      %p298 = scmp.ne.s32.totalorder %s287, %s290
      %p299 = scmp.eq.s32.totalorder %s32, 1
      %p300 = por %p298, %p299
      %p301 = scmp.ne.s32.totalorder %s290, %s291
      %p302 = scmp.eq.s32.totalorder %s32, 0
      %p303 = por %p301, %p302
      %p304 = scmp.ne.s32.totalorder %s290, %s291
      %p305 = scmp.eq.s32.totalorder %s33, 1
      %p306 = por %p304, %p305
      %p308 = scmp.ne.s32.totalorder %s291, %s307
      %p309 = scmp.eq.s32.totalorder %s33, 0
      %p310 = por %p308, %p309
      %s311 = ssub.s32 %s27, %s34
      %p312 = scmp.eq.s32.totalorder %s311, 0
      %s314 = sadd.s32 %s313, 1
      %s315 = scalar_select %p312, %s313, %s314
      %p318 = pneg %p312
      %p319 = scmp.eq.s32.totalorder %s27, 1
      %p320 = por %p318, %p319
      %p321 = scmp.ne.s32.totalorder %s313, %s316
      %p322 = scmp.eq.s32.totalorder %s27, 0
      %p323 = por %p321, %p322
      %p324 = scmp.ne.s32.totalorder %s313, %s316
      %p325 = scmp.eq.s32.totalorder %s32, 1
      %p326 = por %p324, %p325
      %p327 = scmp.ne.s32.totalorder %s316, %s317
      %p328 = scmp.eq.s32.totalorder %s32, 0
      %p329 = por %p327, %p328
      %p330 = scmp.ne.s32.totalorder %s316, %s317
      %p331 = scmp.eq.s32.totalorder %s33, 1
      %p332 = por %p330, %p331
      %p334 = scmp.ne.s32.totalorder %s317, %s333
      %p335 = scmp.eq.s32.totalorder %s33, 0
      %p336 = por %p334, %p335
      %s337 = ssub.s32 %s27, %s34
      %p338 = scmp.eq.s32.totalorder %s337, 0
      %s340 = sadd.s32 %s339, 1
      %s341 = scalar_select %p338, %s339, %s340
      %p344 = pneg %p338
      %p345 = scmp.eq.s32.totalorder %s27, 1
      %p346 = por %p344, %p345
      %p347 = scmp.ne.s32.totalorder %s339, %s342
      %p348 = scmp.eq.s32.totalorder %s27, 0
      %p349 = por %p347, %p348
      %p350 = scmp.ne.s32.totalorder %s339, %s342
      %p351 = scmp.eq.s32.totalorder %s32, 1
      %p352 = por %p350, %p351
      %p353 = scmp.ne.s32.totalorder %s342, %s343
      %p354 = scmp.eq.s32.totalorder %s32, 0
      %p355 = por %p353, %p354
      %p356 = scmp.ne.s32.totalorder %s342, %s343
      %p357 = scmp.eq.s32.totalorder %s33, 1
      %p358 = por %p356, %p357
      %p360 = scmp.ne.s32.totalorder %s343, %s359
      %p361 = scmp.eq.s32.totalorder %s33, 0
      %p362 = por %p360, %p361
      %s363 = ssub.s32 %s27, %s34
      %p364 = scmp.eq.s32.totalorder %s363, 0
      %s366 = sadd.s32 %s365, 1
      %s367 = scalar_select %p364, %s365, %s366
      %p370 = pneg %p364
      %p371 = scmp.eq.s32.totalorder %s27, 1
      %p372 = por %p370, %p371
      %p373 = scmp.ne.s32.totalorder %s365, %s368
      %p374 = scmp.eq.s32.totalorder %s27, 0
      %p375 = por %p373, %p374
      %p376 = scmp.ne.s32.totalorder %s365, %s368
      %p377 = scmp.eq.s32.totalorder %s32, 1
      %p378 = por %p376, %p377
      %p379 = scmp.ne.s32.totalorder %s368, %s369
      %p380 = scmp.eq.s32.totalorder %s32, 0
      %p381 = por %p379, %p380
      %p382 = scmp.ne.s32.totalorder %s368, %s369
      %p383 = scmp.eq.s32.totalorder %s33, 1
      %p384 = por %p382, %p383
      %p386 = scmp.ne.s32.totalorder %s369, %s385
      %p387 = scmp.eq.s32.totalorder %s33, 0
      %p388 = por %p386, %p387
      %s389 = ssub.s32 %s27, %s34
      %p390 = scmp.eq.s32.totalorder %s389, 0
      %s392 = sadd.s32 %s391, 1
      %s393 = scalar_select %p390, %s391, %s392
      %p396 = pneg %p390
      %p397 = scmp.eq.s32.totalorder %s27, 1
      %p398 = por %p396, %p397
      %p399 = scmp.ne.s32.totalorder %s391, %s394
      %p400 = scmp.eq.s32.totalorder %s27, 0
      %p401 = por %p399, %p400
      %p402 = scmp.ne.s32.totalorder %s391, %s394
      %p403 = scmp.eq.s32.totalorder %s32, 1
      %p404 = por %p402, %p403
      %p405 = scmp.ne.s32.totalorder %s394, %s395
      %p406 = scmp.eq.s32.totalorder %s32, 0
      %p407 = por %p405, %p406
      %p408 = scmp.ne.s32.totalorder %s394, %s395
      %p409 = scmp.eq.s32.totalorder %s33, 1
      %p410 = por %p408, %p409
      %p412 = scmp.ne.s32.totalorder %s395, %s411
      %p413 = scmp.eq.s32.totalorder %s33, 0
      %p414 = por %p412, %p413
      %s415 = ssub.s32 %s27, %s34
      %p416 = scmp.eq.s32.totalorder %s415, 0
      %s418 = sadd.s32 %s417, 1
      %s419 = scalar_select %p416, %s417, %s418
      %p422 = pneg %p416
      %p423 = scmp.eq.s32.totalorder %s27, 1
      %p424 = por %p422, %p423
      %p425 = scmp.ne.s32.totalorder %s417, %s420
      %p426 = scmp.eq.s32.totalorder %s27, 0
      %p427 = por %p425, %p426
      %p428 = scmp.ne.s32.totalorder %s417, %s420
      %p429 = scmp.eq.s32.totalorder %s32, 1
      %p430 = por %p428, %p429
      %p431 = scmp.ne.s32.totalorder %s420, %s421
      %p432 = scmp.eq.s32.totalorder %s32, 0
      %p433 = por %p431, %p432
      %p434 = scmp.ne.s32.totalorder %s420, %s421
      %p435 = scmp.eq.s32.totalorder %s33, 1
      %p436 = por %p434, %p435
      %p438 = scmp.ne.s32.totalorder %s421, %s437
      %p439 = scmp.eq.s32.totalorder %s33, 0
      %p440 = por %p438, %p439
      %s441 = ssub.s32 %s27, %s34
      %p442 = scmp.eq.s32.totalorder %s441, 0
      %s444 = sadd.s32 %s443, 1
      %s445 = scalar_select %p442, %s443, %s444
      %p448 = pneg %p442
      %p449 = scmp.eq.s32.totalorder %s27, 1
      %p450 = por %p448, %p449
      %p451 = scmp.ne.s32.totalorder %s443, %s446
      %p452 = scmp.eq.s32.totalorder %s27, 0
      %p453 = por %p451, %p452
      %p454 = scmp.ne.s32.totalorder %s443, %s446
      %p455 = scmp.eq.s32.totalorder %s32, 1
      %p456 = por %p454, %p455
      %p457 = scmp.ne.s32.totalorder %s446, %s447
      %p458 = scmp.eq.s32.totalorder %s32, 0
      %p459 = por %p457, %p458
      %p460 = scmp.ne.s32.totalorder %s446, %s447
      %p461 = scmp.eq.s32.totalorder %s33, 1
      %p462 = por %p460, %p461
      %p464 = scmp.ne.s32.totalorder %s447, %s463
      %p465 = scmp.eq.s32.totalorder %s33, 0
      %p466 = por %p464, %p465
      %s467 = ssub.s32 %s27, %s34
      %p468 = scmp.eq.s32.totalorder %s467, 0
      %s470 = sadd.s32 %s469, 1
      %s471 = scalar_select %p468, %s469, %s470
      %p474 = pneg %p468
      %p475 = scmp.eq.s32.totalorder %s27, 1
      %p476 = por %p474, %p475
      %p477 = scmp.ne.s32.totalorder %s469, %s472
      %p478 = scmp.eq.s32.totalorder %s27, 0
      %p479 = por %p477, %p478
      %p480 = scmp.ne.s32.totalorder %s469, %s472
      %p481 = scmp.eq.s32.totalorder %s32, 1
      %p482 = por %p480, %p481
      %p483 = scmp.ne.s32.totalorder %s472, %s473
      %p484 = scmp.eq.s32.totalorder %s32, 0
      %p485 = por %p483, %p484
      %p486 = scmp.ne.s32.totalorder %s472, %s473
      %p487 = scmp.eq.s32.totalorder %s33, 1
      %p488 = por %p486, %p487
      %p490 = scmp.ne.s32.totalorder %s473, %s489
      %p491 = scmp.eq.s32.totalorder %s33, 0
      %p492 = por %p490, %p491
      %s494 = sadd.s32 %s493, 1
      %p497 = scmp.eq.s32.totalorder %s27, 1
      %p498 = scmp.ne.s32.totalorder %s493, %s495
      %p499 = scmp.eq.s32.totalorder %s27, 0
      %p500 = por %p498, %p499
      %p501 = scmp.ne.s32.totalorder %s493, %s495
      %p502 = scmp.eq.s32.totalorder %s32, 1
      %p503 = por %p501, %p502
      %p504 = scmp.ne.s32.totalorder %s495, %s496
      %p505 = scmp.eq.s32.totalorder %s32, 0
      %p506 = por %p504, %p505
      %p507 = scmp.ne.s32.totalorder %s495, %s496
      %p508 = scmp.eq.s32.totalorder %s33, 1
      %p509 = por %p507, %p508
      %p511 = scmp.ne.s32.totalorder %s496, %s510
      %p512 = scmp.eq.s32.totalorder %s33, 0
      %p513 = por %p511, %p512
      %p514 = scmp.le.s32.totalorder 1, %s27
      %p515 = scmp.lt.s32.totalorder %s27, 3
      %p516 = pnand %p514, %p515
      %p517 = pneg %p516
      // Predicated region
      $region9: #{tpu_custom_call.1} parent=5 // pred_check
        _
      $region10: #{tpu_custom_call.1} parent=5 // pred_check_branch
        %519 = sbr.rel (%p516) target = $region12
      $region11: #{tpu_custom_call.1} parent=5 // pred_region
        %s520 = ssub.s32 %s27, 1
        // Predicated region
        $region13: #{tpu_custom_call.1} parent=11 // pred_check
          %p521 = pneg %p48
        $region14: #{tpu_custom_call.1} parent=11 // pred_check_branch
          %523 = sbr.rel (%p521) target = $region16
        $region15: #{tpu_custom_call.1} parent=11 // pred_region
          %525 = vsyncadd [#allocation4], 0
          %s527 = sshll.u32 %s0, 4
          %s528 = int_to_ptr.hbm [resolvable:$true] %s527
          %s529 = sshll.u32 [#allocation3], 4
          %s530 = int_to_ptr.vmem [resolvable:$true] %s529
          %532 = dma.hbm_to_vmem [thread:$0]  %s528, 128, %s530, [#allocation4]
        $region16: #{tpu_custom_call.1} parent=11 // pred_fallthru
          _
        // Predicated region
        $region17: #{tpu_custom_call.1} parent=11 // pred_check
          %p533 = pneg %p69
        $region18: #{tpu_custom_call.1} parent=11 // pred_check_branch
          %535 = sbr.rel (%p533) target = $region20
        $region19: #{tpu_custom_call.1} parent=11 // pred_region
          %537 = vsyncadd [#allocation7], 0
          %s538 = sshll.u32 %s1, 4
          %s539 = int_to_ptr.hbm [resolvable:$true] %s538
          %s540 = sshll.u32 [#allocation6], 4
          %s541 = int_to_ptr.vmem [resolvable:$true] %s540
          %546 = dma.hbm_to_vmem [thread:$0]  %s539, 256, %s541, [#allocation7], 128, 128, 8
        $region20: #{tpu_custom_call.1} parent=11 // pred_fallthru
          _
      $region12: #{tpu_custom_call.1} parent=5 // pred_fallthru
        _
      %p547 = scmp.lt.s32.totalorder %s27, 2
      // Predicated region
      $region21: #{tpu_custom_call.1} parent=5 // pred_check
        %p548 = pneg %p547
      $region22: #{tpu_custom_call.1} parent=5 // pred_check_branch
        %550 = sbr.rel (%p548) target = $region24
      $region23: #{tpu_custom_call.1} parent=5 // pred_region
        // Predicated region
        $region25: #{tpu_custom_call.1} parent=23 // pred_check
          %p551 = pneg %p89
        $region26: #{tpu_custom_call.1} parent=23 // pred_check_branch
          %553 = sbr.rel (%p551) target = $region28
        $region27: #{tpu_custom_call.1} parent=23 // pred_region
          %p554 = scmp.lt.s32.totalorder %s27, 1
          %s555 = scalar_select %p554, %s27, 1
          %s556 = smul.addr %s555, 4
          %s557 = smul.addr %s556, 4
          %s558 = scalar_lea.vmem %s2, %s557
        $region28: #{tpu_custom_call.1} parent=23 // pred_fallthru
          _
        // Predicated region
        $region29: #{tpu_custom_call.1} parent=23 // pred_check
          %p559 = pneg %p115
        $region30: #{tpu_custom_call.1} parent=23 // pred_check_branch
          %561 = sbr.rel (%p559) target = $region32
        $region31: #{tpu_custom_call.1} parent=23 // pred_region
          %s562 = sand.u32 %s27, 1
          %s563 = scalar_lea.sflag [#allocation4], %s562
          %s564 = sand.u32 %s105, 1
          %s565 = scalar_lea.vmem [#allocation8], %s564
          %567 = vsyncadd %s563, 0
          %s568 = scalar_lea.hbm %s3, %s27
          %s570 = sshll.u32 %s568, 4
          %s571 = int_to_ptr.hbm [resolvable:$true] %s570
          %s572 = sshll.u32 %s565, 4
          %s573 = int_to_ptr.vmem [resolvable:$true] %s572
          %575 = dma.hbm_to_vmem [thread:$0]  %s571, 16, %s573, %s563
        $region32: #{tpu_custom_call.1} parent=23 // pred_fallthru
          _
        // Predicated region
        $region33: #{tpu_custom_call.1} parent=23 // pred_check
          %p576 = pneg %p141
        $region34: #{tpu_custom_call.1} parent=23 // pred_check_branch
          %578 = sbr.rel (%p576) target = $region36
        $region35: #{tpu_custom_call.1} parent=23 // pred_region
          %p579 = scmp.lt.s32.totalorder %s27, 1
          %s580 = scalar_select %p579, %s27, 1
          %s581 = smul.addr %s580, 4
          %s582 = smul.addr %s581, 4
          %s583 = scalar_lea.vmem %s4, %s582
        $region36: #{tpu_custom_call.1} parent=23 // pred_fallthru
          _
        // Predicated region
        $region37: #{tpu_custom_call.1} parent=23 // pred_check
          %p584 = pneg %p167
        $region38: #{tpu_custom_call.1} parent=23 // pred_check_branch
          %586 = sbr.rel (%p584) target = $region40
        $region39: #{tpu_custom_call.1} parent=23 // pred_region
          %p587 = scmp.lt.s32.totalorder %s27, 1
          %s588 = scalar_select %p587, %s27, 1
          %s589 = scalar_lea.vmem %s5, %s588
        $region40: #{tpu_custom_call.1} parent=23 // pred_fallthru
          _
        // Predicated region
        $region41: #{tpu_custom_call.1} parent=23 // pred_check
          %p590 = pneg %p193
        $region42: #{tpu_custom_call.1} parent=23 // pred_check_branch
          %592 = sbr.rel (%p590) target = $region44
        $region43: #{tpu_custom_call.1} parent=23 // pred_region
          %p593 = scmp.lt.s32.totalorder %s27, 1
          %s594 = scalar_select %p593, %s27, 1
          %s595 = smul.addr %s594, 4
          %s596 = smul.addr %s595, 4
          %s597 = scalar_lea.vmem %s6, %s596
        $region44: #{tpu_custom_call.1} parent=23 // pred_fallthru
          _
        // Predicated region
        $region45: #{tpu_custom_call.1} parent=23 // pred_check
          %p598 = pneg %p219
        $region46: #{tpu_custom_call.1} parent=23 // pred_check_branch
          %600 = sbr.rel (%p598) target = $region48
        $region47: #{tpu_custom_call.1} parent=23 // pred_region
          %p601 = scmp.lt.s32.totalorder %s27, 1
          %s602 = scalar_select %p601, %s27, 1
          %s603 = scalar_lea.vmem %s7, %s602
        $region48: #{tpu_custom_call.1} parent=23 // pred_fallthru
          _
        // Predicated region
        $region49: #{tpu_custom_call.1} parent=23 // pred_check
          %p604 = pneg %p245
        $region50: #{tpu_custom_call.1} parent=23 // pred_check_branch
          %606 = sbr.rel (%p604) target = $region52
        $region51: #{tpu_custom_call.1} parent=23 // pred_region
          %s607 = sand.u32 %s27, 1
          %s608 = scalar_lea.sflag [#allocation4], %s607
          %s609 = sand.u32 %s235, 1
          %s610 = smul.addr %s609, 16
          %s611 = scalar_lea.vmem [#allocation9], %s610
          %613 = vsyncadd %s608, 0
          %s614 = smul.addr %s27, 4
          %s615 = smul.addr %s614, 4
          %s616 = scalar_lea.hbm %s8, %s615
          %s617 = sshll.u32 %s616, 4
          %s618 = int_to_ptr.hbm [resolvable:$true] %s617
          %s619 = sshll.u32 %s611, 4
          %s620 = int_to_ptr.vmem [resolvable:$true] %s619
          %625 = dma.hbm_to_vmem [thread:$0]  %s618, 256, %s620, %s608, 64, 64, 4
        $region52: #{tpu_custom_call.1} parent=23 // pred_fallthru
          _
        // Predicated region
        $region53: #{tpu_custom_call.1} parent=23 // pred_check
          %p626 = pneg %p271
        $region54: #{tpu_custom_call.1} parent=23 // pred_check_branch
          %628 = sbr.rel (%p626) target = $region56
        $region55: #{tpu_custom_call.1} parent=23 // pred_region
          %p629 = scmp.lt.s32.totalorder %s27, 1
          %s630 = scalar_select %p629, %s27, 1
          %s631 = scalar_lea.vmem %s9, %s630
        $region56: #{tpu_custom_call.1} parent=23 // pred_fallthru
          _
        // Predicated region
        $region57: #{tpu_custom_call.1} parent=23 // pred_check
          %p632 = pneg %p297
        $region58: #{tpu_custom_call.1} parent=23 // pred_check_branch
          %634 = sbr.rel (%p632) target = $region60
        $region59: #{tpu_custom_call.1} parent=23 // pred_region
          %p635 = scmp.lt.s32.totalorder %s27, 1
          %s636 = scalar_select %p635, %s27, 1
          %s637 = scalar_lea.vmem %s10, %s636
        $region60: #{tpu_custom_call.1} parent=23 // pred_fallthru
          _
        // Predicated region
        $region61: #{tpu_custom_call.1} parent=23 // pred_check
          %p638 = pneg %p323
        $region62: #{tpu_custom_call.1} parent=23 // pred_check_branch
          %640 = sbr.rel (%p638) target = $region64
        $region63: #{tpu_custom_call.1} parent=23 // pred_region
          %s641 = sand.u32 %s27, 1
          %s642 = scalar_lea.sflag [#allocation4], %s641
          %s643 = sand.u32 %s313, 1
          %s644 = scalar_lea.vmem [#allocation10], %s643
          %646 = vsyncadd %s642, 0
          %s647 = scalar_lea.hbm %s11, %s27
          %s649 = sshll.u32 %s647, 4
          %s650 = int_to_ptr.hbm [resolvable:$true] %s649
          %s651 = sshll.u32 %s644, 4
          %s652 = int_to_ptr.vmem [resolvable:$true] %s651
          %654 = dma.hbm_to_vmem [thread:$0]  %s650, 16, %s652, %s642
        $region64: #{tpu_custom_call.1} parent=23 // pred_fallthru
          _
        // Predicated region
        $region65: #{tpu_custom_call.1} parent=23 // pred_check
          %p655 = pneg %p349
        $region66: #{tpu_custom_call.1} parent=23 // pred_check_branch
          %657 = sbr.rel (%p655) target = $region68
        $region67: #{tpu_custom_call.1} parent=23 // pred_region
          %s658 = sand.u32 %s27, 1
          %s659 = scalar_lea.sflag [#allocation4], %s658
          %s660 = sand.u32 %s339, 1
          %s661 = smul.addr %s660, 16
          %s662 = scalar_lea.vmem [#allocation11], %s661
          %664 = vsyncadd %s659, 0
          %s665 = smul.addr %s27, 4
          %s666 = smul.addr %s665, 4
          %s667 = scalar_lea.hbm %s12, %s666
          %s668 = sshll.u32 %s667, 4
          %s669 = int_to_ptr.hbm [resolvable:$true] %s668
          %s670 = sshll.u32 %s662, 4
          %s671 = int_to_ptr.vmem [resolvable:$true] %s670
          %676 = dma.hbm_to_vmem [thread:$0]  %s669, 256, %s671, %s659, 64, 64, 4
        $region68: #{tpu_custom_call.1} parent=23 // pred_fallthru
          _
        // Predicated region
        $region69: #{tpu_custom_call.1} parent=23 // pred_check
          %p677 = pneg %p375
        $region70: #{tpu_custom_call.1} parent=23 // pred_check_branch
          %679 = sbr.rel (%p677) target = $region72
        $region71: #{tpu_custom_call.1} parent=23 // pred_region
          %p680 = scmp.lt.s32.totalorder %s27, 1
          %s681 = scalar_select %p680, %s27, 1
          %s682 = scalar_lea.vmem %s13, %s681
        $region72: #{tpu_custom_call.1} parent=23 // pred_fallthru
          _
        // Predicated region
        $region73: #{tpu_custom_call.1} parent=23 // pred_check
          %p683 = pneg %p401
        $region74: #{tpu_custom_call.1} parent=23 // pred_check_branch
          %685 = sbr.rel (%p683) target = $region76
        $region75: #{tpu_custom_call.1} parent=23 // pred_region
          %p686 = scmp.lt.s32.totalorder %s27, 1
          %s687 = scalar_select %p686, %s27, 1
          %s688 = smul.addr %s687, 8
          %s689 = smul.addr %s688, 4
          %s690 = scalar_lea.vmem %s14, %s689
        $region76: #{tpu_custom_call.1} parent=23 // pred_fallthru
          _
        // Predicated region
        $region77: #{tpu_custom_call.1} parent=23 // pred_check
          %p691 = pneg %p427
        $region78: #{tpu_custom_call.1} parent=23 // pred_check_branch
          %693 = sbr.rel (%p691) target = $region80
        $region79: #{tpu_custom_call.1} parent=23 // pred_region
          %p694 = scmp.lt.s32.totalorder %s27, 1
          %s695 = scalar_select %p694, %s27, 1
          %s696 = scalar_lea.vmem %s15, %s695
        $region80: #{tpu_custom_call.1} parent=23 // pred_fallthru
          _
        // Predicated region
        $region81: #{tpu_custom_call.1} parent=23 // pred_check
          %p697 = pneg %p453
        $region82: #{tpu_custom_call.1} parent=23 // pred_check_branch
          %699 = sbr.rel (%p697) target = $region84
        $region83: #{tpu_custom_call.1} parent=23 // pred_region
          %p700 = scmp.lt.s32.totalorder %s27, 1
          %s701 = scalar_select %p700, %s27, 1
          %s702 = scalar_lea.vmem %s16, %s701
        $region84: #{tpu_custom_call.1} parent=23 // pred_fallthru
          _
        // Predicated region
        $region85: #{tpu_custom_call.1} parent=23 // pred_check
          %p703 = pneg %p479
        $region86: #{tpu_custom_call.1} parent=23 // pred_check_branch
          %705 = sbr.rel (%p703) target = $region88
        $region87: #{tpu_custom_call.1} parent=23 // pred_region
          %s706 = sand.u32 %s27, 1
          %s707 = scalar_lea.sflag [#allocation4], %s706
          %s708 = sand.u32 %s469, 1
          %s709 = scalar_lea.vmem [#allocation12], %s708
          %711 = vsyncadd %s707, 0
          %s712 = scalar_lea.hbm %s17, %s27
          %s714 = sshll.u32 %s712, 4
          %s715 = int_to_ptr.hbm [resolvable:$true] %s714
          %s716 = sshll.u32 %s709, 4
          %s717 = int_to_ptr.vmem [resolvable:$true] %s716
          %719 = dma.hbm_to_vmem [thread:$0]  %s715, 16, %s717, %s707
        $region88: #{tpu_custom_call.1} parent=23 // pred_fallthru
          _
      $region24: #{tpu_custom_call.1} parent=5 // pred_fallthru
        _
      %p720 = scmp.le.s32.totalorder 1, %s27
      %p721 = scmp.lt.s32.totalorder %s27, 3
      %p722 = pnand %p720, %p721
      %p723 = pneg %p722
      // Predicated region
      $region89: #{tpu_custom_call.1} parent=5 // pred_check
        _
      $region90: #{tpu_custom_call.1} parent=5 // pred_check_branch
        %725 = sbr.rel (%p722) target = $region92
      $region91: #{tpu_custom_call.1} parent=5 // pred_region
        %s726 = ssub.s32 %s27, 1
        // Predicated region
        $region93: #{tpu_custom_call.1} parent=91 // pred_check
          %p727 = pneg %p48
        $region94: #{tpu_custom_call.1} parent=91 // pred_check_branch
          %729 = sbr.rel (%p727) target = $region96
        $region95: #{tpu_custom_call.1} parent=91 // pred_region
          %731 = dma.done [#allocation4], 128
        $region96: #{tpu_custom_call.1} parent=91 // pred_fallthru
          _
        // Predicated region
        $region97: #{tpu_custom_call.1} parent=91 // pred_check
          %p732 = pneg %p69
        $region98: #{tpu_custom_call.1} parent=91 // pred_check_branch
          %734 = sbr.rel (%p732) target = $region100
        $region99: #{tpu_custom_call.1} parent=91 // pred_region
          %736 = dma.done [#allocation7], 256
        $region100: #{tpu_custom_call.1} parent=91 // pred_fallthru
          _
        %s737 = sand.u32 %s32, 1
        %s738 = scalar_lea.sflag [#allocation4], %s737
        %s739 = sand.u32 %s108, 1
        %s740 = scalar_lea.vmem [#allocation8], %s739
        // Predicated region
        $region101: #{tpu_custom_call.1} parent=91 // pred_check
          %p741 = pneg %p121
        $region102: #{tpu_custom_call.1} parent=91 // pred_check_branch
          %743 = sbr.rel (%p741) target = $region104
        $region103: #{tpu_custom_call.1} parent=91 // pred_region
          %745 = dma.done %s738, 16
        $region104: #{tpu_custom_call.1} parent=91 // pred_fallthru
          _
        %s746 = sand.u32 %s32, 1
        %s747 = scalar_lea.sflag [#allocation4], %s746
        %s748 = sand.u32 %s238, 1
        %s749 = smul.addr %s748, 16
        %s750 = scalar_lea.vmem [#allocation9], %s749
        // Predicated region
        $region105: #{tpu_custom_call.1} parent=91 // pred_check
          %p751 = pneg %p251
        $region106: #{tpu_custom_call.1} parent=91 // pred_check_branch
          %753 = sbr.rel (%p751) target = $region108
        $region107: #{tpu_custom_call.1} parent=91 // pred_region
          %755 = dma.done %s747, 256
        $region108: #{tpu_custom_call.1} parent=91 // pred_fallthru
          _
        %s756 = sand.u32 %s32, 1
        %s757 = scalar_lea.sflag [#allocation4], %s756
        %s758 = sand.u32 %s316, 1
        %s759 = scalar_lea.vmem [#allocation10], %s758
        // Predicated region
        $region109: #{tpu_custom_call.1} parent=91 // pred_check
          %p760 = pneg %p329
        $region110: #{tpu_custom_call.1} parent=91 // pred_check_branch
          %762 = sbr.rel (%p760) target = $region112
        $region111: #{tpu_custom_call.1} parent=91 // pred_region
          %764 = dma.done %s757, 16
        $region112: #{tpu_custom_call.1} parent=91 // pred_fallthru
          _
        %s765 = sand.u32 %s32, 1
        %s766 = scalar_lea.sflag [#allocation4], %s765
        %s767 = sand.u32 %s342, 1
        %s768 = smul.addr %s767, 16
        %s769 = scalar_lea.vmem [#allocation11], %s768
        // Predicated region
        $region113: #{tpu_custom_call.1} parent=91 // pred_check
          %p770 = pneg %p355
        $region114: #{tpu_custom_call.1} parent=91 // pred_check_branch
          %772 = sbr.rel (%p770) target = $region116
        $region115: #{tpu_custom_call.1} parent=91 // pred_region
          %774 = dma.done %s766, 256
        $region116: #{tpu_custom_call.1} parent=91 // pred_fallthru
          _
        %s775 = sand.u32 %s32, 1
        %s776 = scalar_lea.sflag [#allocation4], %s775
        %s777 = sand.u32 %s472, 1
        %s778 = scalar_lea.vmem [#allocation12], %s777
        // Predicated region
        $region117: #{tpu_custom_call.1} parent=91 // pred_check
          %p779 = pneg %p485
        $region118: #{tpu_custom_call.1} parent=91 // pred_check_branch
          %781 = sbr.rel (%p779) target = $region120
        $region119: #{tpu_custom_call.1} parent=91 // pred_region
          %783 = dma.done %s776, 16
        $region120: #{tpu_custom_call.1} parent=91 // pred_fallthru
          _
        %p784 = pneg %p48
        %p785 = pneg %p45
        %p786 = pneg %p69
        %p787 = pneg %p66
        %p788 = scmp.lt.s32.totalorder %s32, 1
        %s789 = scalar_select %p788, %s32, 1
        %s790 = smul.addr %s789, 4
        %s791 = smul.addr %s790, 4
        %s792 = scalar_lea.vmem %s2, %s791
        %p793 = pneg %p95
        %p794 = pneg %p92
        %s795 = sand.u32 %s32, 1
        %s796 = scalar_lea.sflag [#allocation4], %s795
        %s797 = sand.u32 %s108, 1
        %s798 = scalar_lea.vmem [#allocation8], %s797
        %p799 = pneg %p121
        %p800 = pneg %p118
        %p801 = scmp.lt.s32.totalorder %s32, 1
        %s802 = scalar_select %p801, %s32, 1
        %s803 = smul.addr %s802, 4
        %s804 = smul.addr %s803, 4
        %s805 = scalar_lea.vmem %s4, %s804
        %p806 = pneg %p147
        %p807 = pneg %p144
        %p808 = scmp.lt.s32.totalorder %s32, 1
        %s809 = scalar_select %p808, %s32, 1
        %s810 = scalar_lea.vmem %s5, %s809
        %p811 = pneg %p173
        %p812 = pneg %p170
        %p813 = scmp.lt.s32.totalorder %s32, 1
        %s814 = scalar_select %p813, %s32, 1
        %s815 = smul.addr %s814, 4
        %s816 = smul.addr %s815, 4
        %s817 = scalar_lea.vmem %s6, %s816
        %p818 = pneg %p199
        %p819 = pneg %p196
        %p820 = scmp.lt.s32.totalorder %s32, 1
        %s821 = scalar_select %p820, %s32, 1
        %s822 = scalar_lea.vmem %s7, %s821
        %p823 = pneg %p225
        %p824 = pneg %p222
        %s825 = sand.u32 %s32, 1
        %s826 = scalar_lea.sflag [#allocation4], %s825
        %s827 = sand.u32 %s238, 1
        %s828 = smul.addr %s827, 16
        %s829 = scalar_lea.vmem [#allocation9], %s828
        %p830 = pneg %p251
        %p831 = pneg %p248
        %p832 = scmp.lt.s32.totalorder %s32, 1
        %s833 = scalar_select %p832, %s32, 1
        %s834 = scalar_lea.vmem %s9, %s833
        %p835 = pneg %p277
        %p836 = pneg %p274
        %p837 = scmp.lt.s32.totalorder %s32, 1
        %s838 = scalar_select %p837, %s32, 1
        %s839 = scalar_lea.vmem %s10, %s838
        %p840 = pneg %p303
        %p841 = pneg %p300
        %s842 = sand.u32 %s32, 1
        %s843 = scalar_lea.sflag [#allocation4], %s842
        %s844 = sand.u32 %s316, 1
        %s845 = scalar_lea.vmem [#allocation10], %s844
        %p846 = pneg %p329
        %p847 = pneg %p326
        %s848 = sand.u32 %s32, 1
        %s849 = scalar_lea.sflag [#allocation4], %s848
        %s850 = sand.u32 %s342, 1
        %s851 = smul.addr %s850, 16
        %s852 = scalar_lea.vmem [#allocation11], %s851
        %p853 = pneg %p355
        %p854 = pneg %p352
        %p855 = scmp.lt.s32.totalorder %s32, 1
        %s856 = scalar_select %p855, %s32, 1
        %s857 = scalar_lea.vmem %s13, %s856
        %p858 = pneg %p381
        %p859 = pneg %p378
        %p860 = scmp.lt.s32.totalorder %s32, 1
        %s861 = scalar_select %p860, %s32, 1
        %s862 = smul.addr %s861, 8
        %s863 = smul.addr %s862, 4
        %s864 = scalar_lea.vmem %s14, %s863
        %p865 = pneg %p407
        %p866 = pneg %p404
        %p867 = scmp.lt.s32.totalorder %s32, 1
        %s868 = scalar_select %p867, %s32, 1
        %s869 = scalar_lea.vmem %s15, %s868
        %p870 = pneg %p433
        %p871 = pneg %p430
        %p872 = scmp.lt.s32.totalorder %s32, 1
        %s873 = scalar_select %p872, %s32, 1
        %s874 = scalar_lea.vmem %s16, %s873
        %p875 = pneg %p459
        %p876 = pneg %p456
        %s877 = sand.u32 %s32, 1
        %s878 = scalar_lea.sflag [#allocation4], %s877
        %s879 = sand.u32 %s472, 1
        %s880 = scalar_lea.vmem [#allocation12], %s879
        %p881 = pneg %p485
        %p882 = pneg %p482
        %p883 = pneg %p506
        %p884 = pneg %p503
        %p885 = scmp.lt.s32.totalorder %s32, 1
        %s886 = scalar_select %p885, %s32, 1
        %s887 = smul.addr %s886, 4
        %s888 = smul.addr %s887, 4
        %s889 = scalar_lea.vmem %s2, %s888
        %p890 = scmp.lt.s32.totalorder %s32, 1
        %s891 = scalar_select %p890, %s32, 1
        %s892 = smul.addr %s891, 4
        %s893 = smul.addr %s892, 4
        %s894 = scalar_lea.vmem %s4, %s893
        %p895 = scmp.lt.s32.totalorder %s32, 1
        %s896 = scalar_select %p895, %s32, 1
        %s897 = scalar_lea.vmem %s5, %s896
        %p898 = scmp.lt.s32.totalorder %s32, 1
        %s899 = scalar_select %p898, %s32, 1
        %s900 = smul.addr %s899, 4
        %s901 = smul.addr %s900, 4
        %s902 = scalar_lea.vmem %s6, %s901
        %p903 = scmp.lt.s32.totalorder %s32, 1
        %s904 = scalar_select %p903, %s32, 1
        %s905 = scalar_lea.vmem %s7, %s904
        %p906 = scmp.lt.s32.totalorder %s32, 1
        %s907 = scalar_select %p906, %s32, 1
        %s908 = scalar_lea.vmem %s9, %s907
        %p909 = scmp.lt.s32.totalorder %s32, 1
        %s910 = scalar_select %p909, %s32, 1
        %s911 = scalar_lea.vmem %s10, %s910
        %p912 = scmp.lt.s32.totalorder %s32, 1
        %s913 = scalar_select %p912, %s32, 1
        %s914 = scalar_lea.vmem %s13, %s913
        %p915 = scmp.lt.s32.totalorder %s32, 1
        %s916 = scalar_select %p915, %s32, 1
        %s917 = smul.addr %s916, 8
        %s918 = smul.addr %s917, 4
        %s919 = scalar_lea.vmem %s14, %s918
        %p920 = scmp.lt.s32.totalorder %s32, 1
        %s921 = scalar_select %p920, %s32, 1
        %s922 = scalar_lea.vmem %s15, %s921
        %p923 = scmp.lt.s32.totalorder %s32, 1
        %s924 = scalar_select %p923, %s32, 1
        %s925 = scalar_lea.vmem %s16, %s924
        %p927 = scmp.eq.s32.totalorder %s32, 0
        // Predicated region
        $region121: #{tpu_custom_call.1} parent=91 // pred_check
          %p928 = pneg %p927
        $region122: #{tpu_custom_call.1} parent=91 // pred_check_branch
          %930 = sbr.rel (%p928) target = $region124
        $region123: #{tpu_custom_call.1} parent=91 // pred_region
          %v931 = vld [vmem:[#allocation6] sm:$0xff]
          %v932 = vld [vmem:[#allocation6 + $0x8] sm:$0xff]
          %vm933 = vcmask 261120
          %934 = vst.msk [vmem:[#allocation13] sm:$0xff] %vm933, %v931
          %935 = vst.msk [vmem:[#allocation13 + $0x8] sm:$0xff] %vm933, %v932
        $region124: #{tpu_custom_call.1} parent=91 // pred_fallthru
          _
        %v936 = vld [vmem:[#allocation13] sm:$0xff]
        %v937 = vld [vmem:[#allocation13 + $0x8] sm:$0xff]
        %v938 = vpack.c.bf16 %v937, %v936
        %v939 = vld [vmem:[%s889] sm:$0xf]
        %v940 = vld [vmem:[%s889 + $0x4] sm:$0xf]
        %v941 = vld [vmem:[%s889 + $0x8] sm:$0xf]
        %v942 = vld [vmem:[%s889 + $0xc] sm:$0xf]
        %v943 = vld [vmem:[%s740] sm:$0x1]
        %v945 = vperm.slane %v943, 0
        %v951 = vunpack.c.l.b16 %v939
        %v952 = vunpack.c.l.b16 %v940
        %v953 = vunpack.c.l.b16 %v941
        %v954 = vunpack.c.l.b16 %v942
        %v955 = vpack.c.b16 %v952, %v951
        %v956 = vpack.c.b16 %v954, %v953
        %vm959 = vcmask 261120
        %v961 = vsel %vm959, %v938, 0
        %963 = vmatpush.bf16.msra.mxu0 0
        %964 = vmatpush.bf16.msra.mxu0 0
        %965 = vmatpush.bf16.msra.mxu0 0
        %966 = vmatpush.bf16.msra.mxu0 0
        %967 = vmatpush.bf16.msra.mxu0 0
        %968 = vmatpush.bf16.msra.mxu0 0
        %969 = vmatpush.bf16.msra.mxu0 %v956
        %970 = vmatpush.bf16.msra.mxu0 %v955
        %971 = vmatmul.bf16.gmra.mxu0 %v961
        %v972 = vpop.f32.mrf.mxu0
        %v973 = vadd.f32 %v945, %v972
        %v974 = vpop.f32.mrf.mxu0
        %v975 = vadd.f32 %v945, %v974
        %976 = vdwg.mxu0
        %v977 = vld [vmem:[%s894] sm:$0xf]
        %v978 = vld [vmem:[%s894 + $0x4] sm:$0xf]
        %v979 = vld [vmem:[%s894 + $0x8] sm:$0xf]
        %v980 = vld [vmem:[%s894 + $0xc] sm:$0xf]
        %v981 = vld [vmem:[%s897] sm:$0x1]
        %v983 = vperm.slane %v981, 0
        %v989 = vunpack.c.l.b16 %v977
        %v990 = vunpack.c.l.b16 %v978
        %v991 = vunpack.c.l.b16 %v979
        %v992 = vunpack.c.l.b16 %v980
        %v993 = vpack.c.b16 %v990, %v989
        %v994 = vpack.c.b16 %v992, %v991
        %997 = vmatpush.bf16.msra.mxu0 0
        %998 = vmatpush.bf16.msra.mxu0 0
        %999 = vmatpush.bf16.msra.mxu0 0
        %1000 = vmatpush.bf16.msra.mxu0 0
        %1001 = vmatpush.bf16.msra.mxu0 0
        %1002 = vmatpush.bf16.msra.mxu0 0
        %1003 = vmatpush.bf16.msra.mxu0 %v994
        %1004 = vmatpush.bf16.msra.mxu0 %v993
        %1005 = vmatmul.bf16.gmra.mxu0 %v961
        %v1006 = vpop.f32.mrf.mxu0
        %v1007 = vadd.f32 %v983, %v1006
        %v1008 = vpop.f32.mrf.mxu0
        %v1009 = vadd.f32 %v983, %v1008
        %1010 = vdwg.mxu0
        %v1011 = vld [vmem:[%s902] sm:$0xf]
        %v1012 = vld [vmem:[%s902 + $0x4] sm:$0xf]
        %v1013 = vld [vmem:[%s902 + $0x8] sm:$0xf]
        %v1014 = vld [vmem:[%s902 + $0xc] sm:$0xf]
        %v1015 = vld [vmem:[%s905] sm:$0x1]
        %v1017 = vperm.slane %v1015, 0
        %v1023 = vunpack.c.l.b16 %v1011
        %v1024 = vunpack.c.l.b16 %v1012
        %v1025 = vunpack.c.l.b16 %v1013
        %v1026 = vunpack.c.l.b16 %v1014
        %v1027 = vpack.c.b16 %v1024, %v1023
        %v1028 = vpack.c.b16 %v1026, %v1025
        %1031 = vmatpush.bf16.msra.mxu0 0
        %1032 = vmatpush.bf16.msra.mxu0 0
        %1033 = vmatpush.bf16.msra.mxu0 0
        %1034 = vmatpush.bf16.msra.mxu0 0
        %1035 = vmatpush.bf16.msra.mxu0 0
        %1036 = vmatpush.bf16.msra.mxu0 0
        %1037 = vmatpush.bf16.msra.mxu0 %v1028
        %1038 = vmatpush.bf16.msra.mxu0 %v1027
        %1039 = vmatmul.bf16.gmra.mxu0 %v961
        %v1040 = vpop.f32.mrf.mxu0
        %v1041 = vadd.f32 %v1017, %v1040
        %v1042 = vpop.f32.mrf.mxu0
        %v1043 = vadd.f32 %v1017, %v1042
        %1044 = vdwg.mxu0
        %1047 = vrot.lane.b32.xlu0 %v973, 120
        %v1048 = vpop.permute.xlu0 %1047
        %1049 = vrot.lane.b32.xlu0 %v975, 120
        %v1050 = vpop.permute.xlu0 %1049
        %1053 = vrot.lane.b32.xlu0 %v973, 112
        %v1054 = vpop.permute.xlu0 %1053
        %1055 = vrot.lane.b32.xlu0 %v975, 112
        %v1056 = vpop.permute.xlu0 %1055
        %1059 = vrot.lane.b32.xlu0 %v973, 104
        %v1060 = vpop.permute.xlu0 %1059
        %1061 = vrot.lane.b32.xlu0 %v975, 104
        %v1062 = vpop.permute.xlu0 %1061
        %v1065 = vpack.c.bf16 %v973, %v973
        %v1066 = vpack.c.bf16 %v975, %v975
        %v1067 = vpack.c.bf16 %v1048, %v1048
        %v1068 = vpack.c.bf16 %v1050, %v1050
        %v1069 = vpack.c.bf16 %v1054, %v1054
        %v1070 = vpack.c.bf16 %v1056, %v1056
        %v1071 = vpack.c.bf16 %v1060, %v1060
        %v1072 = vpack.c.bf16 %v1062, %v1062
        %1075 = vrot.lane.b32.xlu0 %v1007, 120
        %v1076 = vpop.permute.xlu0 %1075
        %1077 = vrot.lane.b32.xlu0 %v1009, 120
        %v1078 = vpop.permute.xlu0 %1077
        %1081 = vrot.lane.b32.xlu0 %v1007, 112
        %v1082 = vpop.permute.xlu0 %1081
        %1083 = vrot.lane.b32.xlu0 %v1009, 112
        %v1084 = vpop.permute.xlu0 %1083
        %1087 = vrot.lane.b32.xlu0 %v1007, 104
        %v1088 = vpop.permute.xlu0 %1087
        %1089 = vrot.lane.b32.xlu0 %v1009, 104
        %v1090 = vpop.permute.xlu0 %1089
        %v1093 = vpack.c.bf16 %v1007, %v1007
        %v1094 = vpack.c.bf16 %v1009, %v1009
        %v1095 = vpack.c.bf16 %v1076, %v1076
        %v1096 = vpack.c.bf16 %v1078, %v1078
        %v1097 = vpack.c.bf16 %v1082, %v1082
        %v1098 = vpack.c.bf16 %v1084, %v1084
        %v1099 = vpack.c.bf16 %v1088, %v1088
        %v1100 = vpack.c.bf16 %v1090, %v1090
        %1103 = vrot.lane.b32.xlu0 %v1041, 120
        %v1104 = vpop.permute.xlu0 %1103
        %1105 = vrot.lane.b32.xlu0 %v1043, 120
        %v1106 = vpop.permute.xlu0 %1105
        %1109 = vrot.lane.b32.xlu0 %v1041, 112
        %v1110 = vpop.permute.xlu0 %1109
        %1111 = vrot.lane.b32.xlu0 %v1043, 112
        %v1112 = vpop.permute.xlu0 %1111
        %1115 = vrot.lane.b32.xlu0 %v1041, 104
        %v1116 = vpop.permute.xlu0 %1115
        %1117 = vrot.lane.b32.xlu0 %v1043, 104
        %v1118 = vpop.permute.xlu0 %1117
        %v1121 = vpack.c.bf16 %v1041, %v1041
        %v1122 = vpack.c.bf16 %v1043, %v1043
        %v1123 = vpack.c.bf16 %v1104, %v1104
        %v1124 = vpack.c.bf16 %v1106, %v1106
        %v1125 = vpack.c.bf16 %v1110, %v1110
        %v1126 = vpack.c.bf16 %v1112, %v1112
        %v1127 = vpack.c.bf16 %v1116, %v1116
        %v1128 = vpack.c.bf16 %v1118, %v1118
        %v1129 = vld [vmem:[#allocation3] sm:$0xff]
        %v1131 = vrot.slane %v1129, 1
        %v1132 = vrot.slane %v1129, 2
        %v1133 = vrot.slane %v1129, 3
        %v1134 = vrot.slane %v1129, 4
        %v1135 = vrot.slane %v1129, 5
        %v1136 = vrot.slane %v1129, 6
        %v1137 = vrot.slane %v1129, 7
        %v1138 = vperm.slane %v1129, 0
        %v1139 = vperm.slane %v1131, 0
        %v1140 = vperm.slane %v1132, 0
        %v1141 = vperm.slane %v1133, 0
        %v1142 = vperm.slane %v1134, 0
        %v1143 = vperm.slane %v1135, 0
        %v1144 = vperm.slane %v1136, 0
        %v1145 = vperm.slane %v1137, 0
        %vm1154 = vcmask 64512
        %v1156 = vsel %vm1154, %v1065, 0
        %v1159 = vsel %vm1154, %v1093, 0
        %1161 = vmatpush.bf16.xpose.msra.mxu0 0
        %1162 = vmatpush.bf16.xpose.msra.mxu0 0
        %1163 = vmatpush.bf16.xpose.msra.mxu0 0
        %1164 = vmatpush.bf16.xpose.msra.mxu0 0
        %1165 = vmatpush.bf16.xpose.msra.mxu0 0
        %1166 = vmatpush.bf16.xpose.msra.mxu0 0
        %1167 = vmatpush.bf16.xpose.msra.mxu0 0
        %1168 = vmatpush.bf16.xpose.msra.mxu0 %v1159
        %1169 = vmatmul.bf16.gmra.mxu0 %v1156
        %v1170 = vpop.f32.mrf.mxu0
        %v1171 = vadd.f32 %v1138, %v1170
        %v1172 = vpop.f32.mrf.mxu0
        %1173 = vdwg.mxu0
        %v1175 = vsel %vm1154, %v1066, 0
        %v1178 = vsel %vm1154, %v1094, 0
        %1180 = vmatpush.bf16.xpose.msra.mxu0 0
        %1181 = vmatpush.bf16.xpose.msra.mxu0 0
        %1182 = vmatpush.bf16.xpose.msra.mxu0 0
        %1183 = vmatpush.bf16.xpose.msra.mxu0 0
        %1184 = vmatpush.bf16.xpose.msra.mxu0 0
        %1185 = vmatpush.bf16.xpose.msra.mxu0 0
        %1186 = vmatpush.bf16.xpose.msra.mxu0 0
        %1187 = vmatpush.bf16.xpose.msra.mxu0 %v1178
        %1188 = vmatmul.bf16.gmra.mxu0 %v1175
        %v1189 = vpop.f32.mrf.mxu0
        %v1190 = vadd.f32 %v1139, %v1189
        %v1191 = vpop.f32.mrf.mxu0
        %1192 = vdwg.mxu0
        %v1194 = vsel %vm1154, %v1067, 0
        %v1197 = vsel %vm1154, %v1095, 0
        %1199 = vmatpush.bf16.xpose.msra.mxu0 0
        %1200 = vmatpush.bf16.xpose.msra.mxu0 0
        %1201 = vmatpush.bf16.xpose.msra.mxu0 0
        %1202 = vmatpush.bf16.xpose.msra.mxu0 0
        %1203 = vmatpush.bf16.xpose.msra.mxu0 0
        %1204 = vmatpush.bf16.xpose.msra.mxu0 0
        %1205 = vmatpush.bf16.xpose.msra.mxu0 0
        %1206 = vmatpush.bf16.xpose.msra.mxu0 %v1197
        %1207 = vmatmul.bf16.gmra.mxu0 %v1194
        %v1208 = vpop.f32.mrf.mxu0
        %v1209 = vadd.f32 %v1140, %v1208
        %v1210 = vpop.f32.mrf.mxu0
        %1211 = vdwg.mxu0
        %v1213 = vsel %vm1154, %v1068, 0
        %v1216 = vsel %vm1154, %v1096, 0
        %1218 = vmatpush.bf16.xpose.msra.mxu0 0
        %1219 = vmatpush.bf16.xpose.msra.mxu0 0
        %1220 = vmatpush.bf16.xpose.msra.mxu0 0
        %1221 = vmatpush.bf16.xpose.msra.mxu0 0
        %1222 = vmatpush.bf16.xpose.msra.mxu0 0
        %1223 = vmatpush.bf16.xpose.msra.mxu0 0
        %1224 = vmatpush.bf16.xpose.msra.mxu0 0
        %1225 = vmatpush.bf16.xpose.msra.mxu0 %v1216
        %1226 = vmatmul.bf16.gmra.mxu0 %v1213
        %v1227 = vpop.f32.mrf.mxu0
        %v1228 = vadd.f32 %v1141, %v1227
        %v1229 = vpop.f32.mrf.mxu0
        %1230 = vdwg.mxu0
        %v1232 = vsel %vm1154, %v1069, 0
        %v1235 = vsel %vm1154, %v1097, 0
        %1237 = vmatpush.bf16.xpose.msra.mxu0 0
        %1238 = vmatpush.bf16.xpose.msra.mxu0 0
        %1239 = vmatpush.bf16.xpose.msra.mxu0 0
        %1240 = vmatpush.bf16.xpose.msra.mxu0 0
        %1241 = vmatpush.bf16.xpose.msra.mxu0 0
        %1242 = vmatpush.bf16.xpose.msra.mxu0 0
        %1243 = vmatpush.bf16.xpose.msra.mxu0 0
        %1244 = vmatpush.bf16.xpose.msra.mxu0 %v1235
        %1245 = vmatmul.bf16.gmra.mxu0 %v1232
        %v1246 = vpop.f32.mrf.mxu0
        %v1247 = vadd.f32 %v1142, %v1246
        %v1248 = vpop.f32.mrf.mxu0
        %1249 = vdwg.mxu0
        %v1251 = vsel %vm1154, %v1070, 0
        %v1254 = vsel %vm1154, %v1098, 0
        %1256 = vmatpush.bf16.xpose.msra.mxu0 0
        %1257 = vmatpush.bf16.xpose.msra.mxu0 0
        %1258 = vmatpush.bf16.xpose.msra.mxu0 0
        %1259 = vmatpush.bf16.xpose.msra.mxu0 0
        %1260 = vmatpush.bf16.xpose.msra.mxu0 0
        %1261 = vmatpush.bf16.xpose.msra.mxu0 0
        %1262 = vmatpush.bf16.xpose.msra.mxu0 0
        %1263 = vmatpush.bf16.xpose.msra.mxu0 %v1254
        %1264 = vmatmul.bf16.gmra.mxu0 %v1251
        %v1265 = vpop.f32.mrf.mxu0
        %v1266 = vadd.f32 %v1143, %v1265
        %v1267 = vpop.f32.mrf.mxu0
        %1268 = vdwg.mxu0
        %v1270 = vsel %vm1154, %v1071, 0
        %v1273 = vsel %vm1154, %v1099, 0
        %1275 = vmatpush.bf16.xpose.msra.mxu0 0
        %1276 = vmatpush.bf16.xpose.msra.mxu0 0
        %1277 = vmatpush.bf16.xpose.msra.mxu0 0
        %1278 = vmatpush.bf16.xpose.msra.mxu0 0
        %1279 = vmatpush.bf16.xpose.msra.mxu0 0
        %1280 = vmatpush.bf16.xpose.msra.mxu0 0
        %1281 = vmatpush.bf16.xpose.msra.mxu0 0
        %1282 = vmatpush.bf16.xpose.msra.mxu0 %v1273
        %1283 = vmatmul.bf16.gmra.mxu0 %v1270
        %v1284 = vpop.f32.mrf.mxu0
        %v1285 = vadd.f32 %v1144, %v1284
        %v1286 = vpop.f32.mrf.mxu0
        %1287 = vdwg.mxu0
        %v1289 = vsel %vm1154, %v1072, 0
        %v1292 = vsel %vm1154, %v1100, 0
        %1294 = vmatpush.bf16.xpose.msra.mxu0 0
        %1295 = vmatpush.bf16.xpose.msra.mxu0 0
        %1296 = vmatpush.bf16.xpose.msra.mxu0 0
        %1297 = vmatpush.bf16.xpose.msra.mxu0 0
        %1298 = vmatpush.bf16.xpose.msra.mxu0 0
        %1299 = vmatpush.bf16.xpose.msra.mxu0 0
        %1300 = vmatpush.bf16.xpose.msra.mxu0 0
        %1301 = vmatpush.bf16.xpose.msra.mxu0 %v1292
        %1302 = vmatmul.bf16.gmra.mxu0 %v1289
        %v1303 = vpop.f32.mrf.mxu0
        %v1304 = vadd.f32 %v1145, %v1303
        %v1305 = vpop.f32.mrf.mxu0
        %1306 = vdwg.mxu0
        %v1307 = vsel %vm1154, %v1171, -inf
        %1308 = vmax.xlane.f32.xlu0 %v1307
        %v1309 = vpop.xlane.xlu0 %1308
        %v1310 = vsel %vm1154, %v1190, -inf
        %1311 = vmax.xlane.f32.xlu0 %v1310
        %v1312 = vpop.xlane.xlu0 %1311
        %v1313 = vsel %vm1154, %v1209, -inf
        %1314 = vmax.xlane.f32.xlu0 %v1313
        %v1315 = vpop.xlane.xlu0 %1314
        %v1316 = vsel %vm1154, %v1228, -inf
        %1317 = vmax.xlane.f32.xlu0 %v1316
        %v1318 = vpop.xlane.xlu0 %1317
        %v1319 = vsel %vm1154, %v1247, -inf
        %1320 = vmax.xlane.f32.xlu0 %v1319
        %v1321 = vpop.xlane.xlu0 %1320
        %v1322 = vsel %vm1154, %v1266, -inf
        %1323 = vmax.xlane.f32.xlu0 %v1322
        %v1324 = vpop.xlane.xlu0 %1323
        %v1325 = vsel %vm1154, %v1285, -inf
        %1326 = vmax.xlane.f32.xlu0 %v1325
        %v1327 = vpop.xlane.xlu0 %1326
        %v1328 = vsel %vm1154, %v1304, -inf
        %1329 = vmax.xlane.f32.xlu0 %v1328
        %v1330 = vpop.xlane.xlu0 %1329
        %v1331 = vsub.f32 %v1171, %v1309
        %v1332 = vsub.f32 %v1190, %v1312
        %v1333 = vsub.f32 %v1209, %v1315
        %v1334 = vsub.f32 %v1228, %v1318
        %v1335 = vsub.f32 %v1247, %v1321
        %v1336 = vsub.f32 %v1266, %v1324
        %v1337 = vsub.f32 %v1285, %v1327
        %v1338 = vsub.f32 %v1304, %v1330
        %v1339 = vmul.f32 %v1331, 1.442695
        %v1340 = vpow.pop %v1339
        %v1341 = vmul.f32 %v1332, 1.442695
        %v1342 = vpow.pop %v1341
        %v1343 = vmul.f32 %v1333, 1.442695
        %v1344 = vpow.pop %v1343
        %v1345 = vmul.f32 %v1334, 1.442695
        %v1346 = vpow.pop %v1345
        %v1347 = vmul.f32 %v1335, 1.442695
        %v1348 = vpow.pop %v1347
        %v1349 = vmul.f32 %v1336, 1.442695
        %v1350 = vpow.pop %v1349
        %v1351 = vmul.f32 %v1337, 1.442695
        %v1352 = vpow.pop %v1351
        %v1353 = vmul.f32 %v1338, 1.442695
        %v1354 = vpow.pop %v1353
        %v1355 = vsel %vm1154, %v1340, 0.0
        %1356 = vadd.xlane.f32.xlu0 %v1355
        %v1357 = vpop.xlane.xlu0 %1356
        %v1358 = vsel %vm1154, %v1342, 0.0
        %1359 = vadd.xlane.f32.xlu0 %v1358
        %v1360 = vpop.xlane.xlu0 %1359
        %v1361 = vsel %vm1154, %v1344, 0.0
        %1362 = vadd.xlane.f32.xlu0 %v1361
        %v1363 = vpop.xlane.xlu0 %1362
        %v1364 = vsel %vm1154, %v1346, 0.0
        %1365 = vadd.xlane.f32.xlu0 %v1364
        %v1366 = vpop.xlane.xlu0 %1365
        %v1367 = vsel %vm1154, %v1348, 0.0
        %1368 = vadd.xlane.f32.xlu0 %v1367
        %v1369 = vpop.xlane.xlu0 %1368
        %v1370 = vsel %vm1154, %v1350, 0.0
        %1371 = vadd.xlane.f32.xlu0 %v1370
        %v1372 = vpop.xlane.xlu0 %1371
        %v1373 = vsel %vm1154, %v1352, 0.0
        %1374 = vadd.xlane.f32.xlu0 %v1373
        %v1375 = vpop.xlane.xlu0 %1374
        %v1376 = vsel %vm1154, %v1354, 0.0
        %1377 = vadd.xlane.f32.xlu0 %v1376
        %v1378 = vpop.xlane.xlu0 %1377
        %v1379 = vrcp.pop %v1357
        %v1380 = vmul.f32 %v1357, %v1379
        %v1381 = vsub.f32 1.0, %v1380
        %v1382 = vmul.f32 %v1379, %v1381
        %v1383 = vadd.f32 %v1379, %v1382
        %vm1384 = vweird.f32 %v1357
        %vm1385 = vweird.f32 %v1379
        %vm1386 = vmor %vm1384, %vm1385
        %v1387 = vsel %vm1386, %v1379, %v1383
        %v1388 = vand.u32 2147483647, %v1357
        %vm1389 = vcmp.eq.f32.partialorder %v1388, 8.507059e+37
        %v1390 = vand.u32 %v1357, 2147483648
        %v1391 = vor.u32 1.1754944e-38, %v1390
        %v1392 = vsel %vm1389, %v1391, %v1387
        %v1393 = vrcp.pop %v1360
        %v1394 = vmul.f32 %v1360, %v1393
        %v1395 = vsub.f32 1.0, %v1394
        %v1396 = vmul.f32 %v1393, %v1395
        %v1397 = vadd.f32 %v1393, %v1396
        %vm1398 = vweird.f32 %v1360
        %vm1399 = vweird.f32 %v1393
        %vm1400 = vmor %vm1398, %vm1399
        %v1401 = vsel %vm1400, %v1393, %v1397
        %v1402 = vand.u32 2147483647, %v1360
        %vm1403 = vcmp.eq.f32.partialorder %v1402, 8.507059e+37
        %v1404 = vand.u32 %v1360, 2147483648
        %v1405 = vor.u32 1.1754944e-38, %v1404
        %v1406 = vsel %vm1403, %v1405, %v1401
        %v1407 = vrcp.pop %v1363
        %v1408 = vmul.f32 %v1363, %v1407
        %v1409 = vsub.f32 1.0, %v1408
        %v1410 = vmul.f32 %v1407, %v1409
        %v1411 = vadd.f32 %v1407, %v1410
        %vm1412 = vweird.f32 %v1363
        %vm1413 = vweird.f32 %v1407
        %vm1414 = vmor %vm1412, %vm1413
        %v1415 = vsel %vm1414, %v1407, %v1411
        %v1416 = vand.u32 2147483647, %v1363
        %vm1417 = vcmp.eq.f32.partialorder %v1416, 8.507059e+37
        %v1418 = vand.u32 %v1363, 2147483648
        %v1419 = vor.u32 1.1754944e-38, %v1418
        %v1420 = vsel %vm1417, %v1419, %v1415
        %v1421 = vrcp.pop %v1366
        %v1422 = vmul.f32 %v1366, %v1421
        %v1423 = vsub.f32 1.0, %v1422
        %v1424 = vmul.f32 %v1421, %v1423
        %v1425 = vadd.f32 %v1421, %v1424
        %vm1426 = vweird.f32 %v1366
        %vm1427 = vweird.f32 %v1421
        %vm1428 = vmor %vm1426, %vm1427
        %v1429 = vsel %vm1428, %v1421, %v1425
        %v1430 = vand.u32 2147483647, %v1366
        %vm1431 = vcmp.eq.f32.partialorder %v1430, 8.507059e+37
        %v1432 = vand.u32 %v1366, 2147483648
        %v1433 = vor.u32 1.1754944e-38, %v1432
        %v1434 = vsel %vm1431, %v1433, %v1429
        %v1435 = vrcp.pop %v1369
        %v1436 = vmul.f32 %v1369, %v1435
        %v1437 = vsub.f32 1.0, %v1436
        %v1438 = vmul.f32 %v1435, %v1437
        %v1439 = vadd.f32 %v1435, %v1438
        %vm1440 = vweird.f32 %v1369
        %vm1441 = vweird.f32 %v1435
        %vm1442 = vmor %vm1440, %vm1441
        %v1443 = vsel %vm1442, %v1435, %v1439
        %v1444 = vand.u32 2147483647, %v1369
        %vm1445 = vcmp.eq.f32.partialorder %v1444, 8.507059e+37
        %v1446 = vand.u32 %v1369, 2147483648
        %v1447 = vor.u32 1.1754944e-38, %v1446
        %v1448 = vsel %vm1445, %v1447, %v1443
        %v1449 = vrcp.pop %v1372
        %v1450 = vmul.f32 %v1372, %v1449
        %v1451 = vsub.f32 1.0, %v1450
        %v1452 = vmul.f32 %v1449, %v1451
        %v1453 = vadd.f32 %v1449, %v1452
        %vm1454 = vweird.f32 %v1372
        %vm1455 = vweird.f32 %v1449
        %vm1456 = vmor %vm1454, %vm1455
        %v1457 = vsel %vm1456, %v1449, %v1453
        %v1458 = vand.u32 2147483647, %v1372
        %vm1459 = vcmp.eq.f32.partialorder %v1458, 8.507059e+37
        %v1460 = vand.u32 %v1372, 2147483648
        %v1461 = vor.u32 1.1754944e-38, %v1460
        %v1462 = vsel %vm1459, %v1461, %v1457
        %v1463 = vrcp.pop %v1375
        %v1464 = vmul.f32 %v1375, %v1463
        %v1465 = vsub.f32 1.0, %v1464
        %v1466 = vmul.f32 %v1463, %v1465
        %v1467 = vadd.f32 %v1463, %v1466
        %vm1468 = vweird.f32 %v1375
        %vm1469 = vweird.f32 %v1463
        %vm1470 = vmor %vm1468, %vm1469
        %v1471 = vsel %vm1470, %v1463, %v1467
        %v1472 = vand.u32 2147483647, %v1375
        %vm1473 = vcmp.eq.f32.partialorder %v1472, 8.507059e+37
        %v1474 = vand.u32 %v1375, 2147483648
        %v1475 = vor.u32 1.1754944e-38, %v1474
        %v1476 = vsel %vm1473, %v1475, %v1471
        %v1477 = vrcp.pop %v1378
        %v1478 = vmul.f32 %v1378, %v1477
        %v1479 = vsub.f32 1.0, %v1478
        %v1480 = vmul.f32 %v1477, %v1479
        %v1481 = vadd.f32 %v1477, %v1480
        %vm1482 = vweird.f32 %v1378
        %vm1483 = vweird.f32 %v1477
        %vm1484 = vmor %vm1482, %vm1483
        %v1485 = vsel %vm1484, %v1477, %v1481
        %v1486 = vand.u32 2147483647, %v1378
        %vm1487 = vcmp.eq.f32.partialorder %v1486, 8.507059e+37
        %v1488 = vand.u32 %v1378, 2147483648
        %v1489 = vor.u32 1.1754944e-38, %v1488
        %v1490 = vsel %vm1487, %v1489, %v1485
        %v1491 = vmul.f32 %v1340, %v1392
        %v1492 = vmul.f32 %v1342, %v1406
        %v1493 = vmul.f32 %v1344, %v1420
        %v1494 = vmul.f32 %v1346, %v1434
        %v1495 = vmul.f32 %v1348, %v1448
        %v1496 = vmul.f32 %v1350, %v1462
        %v1497 = vmul.f32 %v1352, %v1476
        %v1498 = vmul.f32 %v1354, %v1490
        %v1499 = vpack.c.bf16 %v1491, %v1491
        %v1500 = vpack.c.bf16 %v1492, %v1492
        %v1501 = vpack.c.bf16 %v1493, %v1493
        %v1502 = vpack.c.bf16 %v1494, %v1494
        %v1503 = vpack.c.bf16 %v1495, %v1495
        %v1504 = vpack.c.bf16 %v1496, %v1496
        %v1505 = vpack.c.bf16 %v1497, %v1497
        %v1506 = vpack.c.bf16 %v1498, %v1498
        %v1508 = vsel %vm1154, %v1499, 0
        %vm1510 = vcmask 1043456
        %v1512 = vsel %vm1510, %v1121, 0
        %1514 = vmatpush.bf16.msra.mxu0 0
        %1515 = vmatpush.bf16.msra.mxu0 0
        %1516 = vmatpush.bf16.msra.mxu0 0
        %1517 = vmatpush.bf16.msra.mxu0 0
        %1518 = vmatpush.bf16.msra.mxu0 0
        %1519 = vmatpush.bf16.msra.mxu0 0
        %1520 = vmatpush.bf16.msra.mxu0 0
        %1521 = vmatpush.bf16.msra.mxu0 %v1512
        %1522 = vmatmul.bf16.gmra.mxu0 %v1508
        %v1523 = vpop.f32.mrf.mxu0
        %v1524 = vadd.f32 0.0, %v1523
        %v1525 = vpop.f32.mrf.mxu0
        %1526 = vdwg.mxu0
        %v1528 = vsel %vm1154, %v1500, 0
        %v1531 = vsel %vm1510, %v1122, 0
        %1533 = vmatpush.bf16.msra.mxu0 0
        %1534 = vmatpush.bf16.msra.mxu0 0
        %1535 = vmatpush.bf16.msra.mxu0 0
        %1536 = vmatpush.bf16.msra.mxu0 0
        %1537 = vmatpush.bf16.msra.mxu0 0
        %1538 = vmatpush.bf16.msra.mxu0 0
        %1539 = vmatpush.bf16.msra.mxu0 0
        %1540 = vmatpush.bf16.msra.mxu0 %v1531
        %1541 = vmatmul.bf16.gmra.mxu0 %v1528
        %v1542 = vpop.f32.mrf.mxu0
        %v1543 = vadd.f32 0.0, %v1542
        %v1544 = vpop.f32.mrf.mxu0
        %1545 = vdwg.mxu0
        %v1547 = vsel %vm1154, %v1501, 0
        %v1550 = vsel %vm1510, %v1123, 0
        %1552 = vmatpush.bf16.msra.mxu0 0
        %1553 = vmatpush.bf16.msra.mxu0 0
        %1554 = vmatpush.bf16.msra.mxu0 0
        %1555 = vmatpush.bf16.msra.mxu0 0
        %1556 = vmatpush.bf16.msra.mxu0 0
        %1557 = vmatpush.bf16.msra.mxu0 0
        %1558 = vmatpush.bf16.msra.mxu0 0
        %1559 = vmatpush.bf16.msra.mxu0 %v1550
        %1560 = vmatmul.bf16.gmra.mxu0 %v1547
        %v1561 = vpop.f32.mrf.mxu0
        %v1562 = vadd.f32 0.0, %v1561
        %v1563 = vpop.f32.mrf.mxu0
        %1564 = vdwg.mxu0
        %v1566 = vsel %vm1154, %v1502, 0
        %v1569 = vsel %vm1510, %v1124, 0
        %1571 = vmatpush.bf16.msra.mxu0 0
        %1572 = vmatpush.bf16.msra.mxu0 0
        %1573 = vmatpush.bf16.msra.mxu0 0
        %1574 = vmatpush.bf16.msra.mxu0 0
        %1575 = vmatpush.bf16.msra.mxu0 0
        %1576 = vmatpush.bf16.msra.mxu0 0
        %1577 = vmatpush.bf16.msra.mxu0 0
        %1578 = vmatpush.bf16.msra.mxu0 %v1569
        %1579 = vmatmul.bf16.gmra.mxu0 %v1566
        %v1580 = vpop.f32.mrf.mxu0
        %v1581 = vadd.f32 0.0, %v1580
        %v1582 = vpop.f32.mrf.mxu0
        %1583 = vdwg.mxu0
        %v1585 = vsel %vm1154, %v1503, 0
        %v1588 = vsel %vm1510, %v1125, 0
        %1590 = vmatpush.bf16.msra.mxu0 0
        %1591 = vmatpush.bf16.msra.mxu0 0
        %1592 = vmatpush.bf16.msra.mxu0 0
        %1593 = vmatpush.bf16.msra.mxu0 0
        %1594 = vmatpush.bf16.msra.mxu0 0
        %1595 = vmatpush.bf16.msra.mxu0 0
        %1596 = vmatpush.bf16.msra.mxu0 0
        %1597 = vmatpush.bf16.msra.mxu0 %v1588
        %1598 = vmatmul.bf16.gmra.mxu0 %v1585
        %v1599 = vpop.f32.mrf.mxu0
        %v1600 = vadd.f32 0.0, %v1599
        %v1601 = vpop.f32.mrf.mxu0
        %1602 = vdwg.mxu0
        %v1604 = vsel %vm1154, %v1504, 0
        %v1607 = vsel %vm1510, %v1126, 0
        %1609 = vmatpush.bf16.msra.mxu0 0
        %1610 = vmatpush.bf16.msra.mxu0 0
        %1611 = vmatpush.bf16.msra.mxu0 0
        %1612 = vmatpush.bf16.msra.mxu0 0
        %1613 = vmatpush.bf16.msra.mxu0 0
        %1614 = vmatpush.bf16.msra.mxu0 0
        %1615 = vmatpush.bf16.msra.mxu0 0
        %1616 = vmatpush.bf16.msra.mxu0 %v1607
        %1617 = vmatmul.bf16.gmra.mxu0 %v1604
        %v1618 = vpop.f32.mrf.mxu0
        %v1619 = vadd.f32 0.0, %v1618
        %v1620 = vpop.f32.mrf.mxu0
        %1621 = vdwg.mxu0
        %v1623 = vsel %vm1154, %v1505, 0
        %v1626 = vsel %vm1510, %v1127, 0
        %1628 = vmatpush.bf16.msra.mxu0 0
        %1629 = vmatpush.bf16.msra.mxu0 0
        %1630 = vmatpush.bf16.msra.mxu0 0
        %1631 = vmatpush.bf16.msra.mxu0 0
        %1632 = vmatpush.bf16.msra.mxu0 0
        %1633 = vmatpush.bf16.msra.mxu0 0
        %1634 = vmatpush.bf16.msra.mxu0 0
        %1635 = vmatpush.bf16.msra.mxu0 %v1626
        %1636 = vmatmul.bf16.gmra.mxu0 %v1623
        %v1637 = vpop.f32.mrf.mxu0
        %v1638 = vadd.f32 0.0, %v1637
        %v1639 = vpop.f32.mrf.mxu0
        %1640 = vdwg.mxu0
        %v1642 = vsel %vm1154, %v1506, 0
        %v1645 = vsel %vm1510, %v1128, 0
        %1647 = vmatpush.bf16.msra.mxu0 0
        %1648 = vmatpush.bf16.msra.mxu0 0
        %1649 = vmatpush.bf16.msra.mxu0 0
        %1650 = vmatpush.bf16.msra.mxu0 0
        %1651 = vmatpush.bf16.msra.mxu0 0
        %1652 = vmatpush.bf16.msra.mxu0 0
        %1653 = vmatpush.bf16.msra.mxu0 0
        %1654 = vmatpush.bf16.msra.mxu0 %v1645
        %1655 = vmatmul.bf16.gmra.mxu0 %v1642
        %v1656 = vpop.f32.mrf.mxu0
        %v1657 = vadd.f32 0.0, %v1656
        %v1658 = vpop.f32.mrf.mxu0
        %1659 = vdwg.mxu0
        %1660 = vst.msk [vmem:[#allocation2] sm:$0xff] %vm1154, %v1524
        %1661 = vst.msk [vmem:[#allocation2 + $0x8] sm:$0xff] %vm1154, %v1543
        %1664 = vrot.lane.b32.xlu0 %v1562, 8
        %v1665 = vpop.permute.xlu0 %1664
        %1666 = vrot.lane.b32.xlu0 %v1581, 8
        %v1667 = vpop.permute.xlu0 %1666
        %vm1670 = vcmask 130112
        %1671 = vst.msk [vmem:[#allocation2] sm:$0xff] %vm1670, %v1665
        %1672 = vst.msk [vmem:[#allocation2 + $0x8] sm:$0xff] %vm1670, %v1667
        %1675 = vrot.lane.b32.xlu0 %v1600, 16
        %v1676 = vpop.permute.xlu0 %1675
        %1677 = vrot.lane.b32.xlu0 %v1619, 16
        %v1678 = vpop.permute.xlu0 %1677
        %vm1681 = vcmask 195712
        %1682 = vst.msk [vmem:[#allocation2] sm:$0xff] %vm1681, %v1676
        %1683 = vst.msk [vmem:[#allocation2 + $0x8] sm:$0xff] %vm1681, %v1678
        %1686 = vrot.lane.b32.xlu0 %v1638, 24
        %v1687 = vpop.permute.xlu0 %1686
        %1688 = vrot.lane.b32.xlu0 %v1657, 24
        %v1689 = vpop.permute.xlu0 %1688
        %vm1692 = vcmask 261312
        %1693 = vst.msk [vmem:[#allocation2] sm:$0xff] %vm1692, %v1687
        %1694 = vst.msk [vmem:[#allocation2 + $0x8] sm:$0xff] %vm1692, %v1689
        %v1695 = vld [vmem:[#allocation2] sm:$0xff]
        %v1696 = vld [vmem:[#allocation2 + $0x8] sm:$0xff]
        %v1697 = vpack.c.bf16 %v1696, %v1695
        %v1698 = vld [vmem:[%s750] sm:$0xf]
        %v1699 = vld [vmem:[%s750 + $0x4] sm:$0xf]
        %v1700 = vld [vmem:[%s750 + $0x8] sm:$0xf]
        %v1701 = vld [vmem:[%s750 + $0xc] sm:$0xf]
        %v1702 = vld [vmem:[%s908] sm:$0x1]
        %v1704 = vperm.slane %v1702, 0
        %v1710 = vunpack.c.l.b16 %v1698
        %v1711 = vunpack.c.l.b16 %v1699
        %v1712 = vunpack.c.l.b16 %v1700
        %v1713 = vunpack.c.l.b16 %v1701
        %v1714 = vpack.c.b16 %v1711, %v1710
        %v1715 = vpack.c.b16 %v1713, %v1712
        %v1719 = vsel %vm959, %v1697, 0
        %1721 = vmatpush.bf16.msra.mxu0 0
        %1722 = vmatpush.bf16.msra.mxu0 0
        %1723 = vmatpush.bf16.msra.mxu0 0
        %1724 = vmatpush.bf16.msra.mxu0 0
        %1725 = vmatpush.bf16.msra.mxu0 0
        %1726 = vmatpush.bf16.msra.mxu0 0
        %1727 = vmatpush.bf16.msra.mxu0 %v1715
        %1728 = vmatpush.bf16.msra.mxu0 %v1714
        %1729 = vmatmul.bf16.gmra.mxu0 %v1719
        %v1730 = vpop.f32.mrf.mxu0
        %v1731 = vadd.f32 %v1704, %v1730
        %v1732 = vpop.f32.mrf.mxu0
        %v1733 = vadd.f32 %v1704, %v1732
        %1734 = vdwg.mxu0
        %v1735 = vadd.f32 %v1731, %v936
        %v1736 = vadd.f32 %v1733, %v937
        %v1737 = vld [vmem:[%s911] sm:$0x1]
        %v1738 = vld [vmem:[%s759] sm:$0x1]
        %v1739 = vsel %vm959, %v1735, 0.0
        %1740 = vadd.xlane.f32.xlu0 %v1739
        %v1741 = vpop.xlane.xlu0 %1740
        %v1742 = vsel %vm959, %v1736, 0.0
        %1743 = vadd.xlane.f32.xlu0 %v1742
        %v1744 = vpop.xlane.xlu0 %1743
        %v1745 = vrcp.pop 32.0
        %v1746 = vmul.f32 32.0, %v1745
        %v1747 = vsub.f32 1.0, %v1746
        %v1748 = vmul.f32 %v1745, %v1747
        %v1749 = vadd.f32 %v1745, %v1748
        %vm1750 = vweird.f32 %v1745
        %v1751 = vsel %vm1750, %v1745, %v1749
        %v1752 = vmul.f32 %v1741, %v1751
        %v1753 = vmul.f32 %v1744, %v1751
        %v1754 = vsub.f32 %v1735, %v1752
        %v1755 = vsub.f32 %v1736, %v1753
        %v1756 = vmul.f32 %v1754, %v1754
        %v1757 = vmul.f32 %v1755, %v1755
        %v1758 = vsel %vm959, %v1756, 0.0
        %1759 = vadd.xlane.f32.xlu0 %v1758
        %v1760 = vpop.xlane.xlu0 %1759
        %v1761 = vsel %vm959, %v1757, 0.0
        %1762 = vadd.xlane.f32.xlu0 %v1761
        %v1763 = vpop.xlane.xlu0 %1762
        %v1764 = vmul.f32 %v1760, %v1751
        %v1765 = vmul.f32 %v1763, %v1751
        %v1766 = vadd.f32 %v1764, 1e-12
        %v1767 = vadd.f32 %v1765, 1e-12
        %v1768 = vrsqrt.pop %v1766
        %v1769 = vmul.f32 %v1768, %v1766
        %v1770 = vmul.f32 %v1769, %v1768
        %v1771 = vmul.f32 0.5, %v1770
        %v1772 = vsub.f32 1.5, %v1771
        %v1773 = vmul.f32 %v1768, %v1772
        %vm1774 = vweird.f32 %v1766
        %vm1775 = vweird.f32 %v1768
        %vm1776 = vmor %vm1774, %vm1775
        %v1777 = vsel %vm1776, %v1768, %v1773
        %v1778 = vrsqrt.pop %v1767
        %v1779 = vmul.f32 %v1778, %v1767
        %v1780 = vmul.f32 %v1779, %v1778
        %v1781 = vmul.f32 0.5, %v1780
        %v1782 = vsub.f32 1.5, %v1781
        %v1783 = vmul.f32 %v1778, %v1782
        %vm1784 = vweird.f32 %v1767
        %vm1785 = vweird.f32 %v1778
        %vm1786 = vmor %vm1784, %vm1785
        %v1787 = vsel %vm1786, %v1778, %v1783
        %v1788 = vmul.f32 %v1754, %v1777
        %v1789 = vmul.f32 %v1755, %v1787
        %v1791 = vperm.slane %v1737, 0
        %v1793 = vmul.f32 %v1788, %v1791
        %v1794 = vmul.f32 %v1789, %v1791
        %v1796 = vperm.slane %v1738, 0
        %v1798 = vadd.f32 %v1793, %v1796
        %v1799 = vadd.f32 %v1794, %v1796
        %v1800 = vpack.c.bf16 %v1799, %v1798
        %v1801 = vld [vmem:[%s769] sm:$0xf]
        %v1802 = vld [vmem:[%s769 + $0x4] sm:$0xf]
        %v1803 = vld [vmem:[%s769 + $0x8] sm:$0xf]
        %v1804 = vld [vmem:[%s769 + $0xc] sm:$0xf]
        %v1805 = vld [vmem:[%s914] sm:$0x1]
        %v1807 = vperm.slane %v1805, 0
        %v1813 = vunpack.c.l.b16 %v1801
        %v1814 = vunpack.c.l.b16 %v1802
        %v1815 = vunpack.c.l.b16 %v1803
        %v1816 = vunpack.c.l.b16 %v1804
        %v1817 = vpack.c.b16 %v1814, %v1813
        %v1818 = vpack.c.b16 %v1816, %v1815
        %v1822 = vsel %vm959, %v1800, 0
        %1824 = vmatpush.bf16.msra.mxu0 0
        %1825 = vmatpush.bf16.msra.mxu0 0
        %1826 = vmatpush.bf16.msra.mxu0 0
        %1827 = vmatpush.bf16.msra.mxu0 0
        %1828 = vmatpush.bf16.msra.mxu0 0
        %1829 = vmatpush.bf16.msra.mxu0 0
        %1830 = vmatpush.bf16.msra.mxu0 %v1818
        %1831 = vmatpush.bf16.msra.mxu0 %v1817
        %1832 = vmatmul.bf16.gmra.mxu0 %v1822
        %v1833 = vpop.f32.mrf.mxu0
        %v1834 = vadd.f32 %v1807, %v1833
        %v1835 = vpop.f32.mrf.mxu0
        %v1836 = vadd.f32 %v1807, %v1835
        %1837 = vdwg.mxu0
        %v1838 = vmul.f32 %v1834, 0.5
        %v1839 = vmul.f32 %v1836, 0.5
        %v1840 = vmul.f32 %v1834, 0.70710677
        %v1841 = vmul.f32 %v1836, 0.70710677
        %v1842 = vmul.f32 %v1840, %v1840
        %v1843 = vmin.f32 16.0, %v1842
        %v1844 = vmul.f32 %v1843, 2.1237322e-06
        %v1845 = vadd.f32 %v1844, 0.00028619796
        %v1846 = vmul.f32 %v1843, %v1845
        %v1847 = vadd.f32 %v1846, 0.0036580483
        %v1848 = vmul.f32 %v1843, %v1847
        %v1849 = vadd.f32 %v1848, 0.05243302
        %v1850 = vmul.f32 %v1843, %v1849
        %v1851 = vadd.f32 %v1850, 0.18741608
        %v1852 = vmul.f32 %v1843, %v1851
        %v1853 = vadd.f32 %v1852, 1.1283791
        %v1854 = vmul.f32 %v1840, %v1853
        %v1855 = vmul.f32 %v1843, 3.8918573e-05
        %v1856 = vadd.f32 %v1855, 0.001143296
        %v1857 = vmul.f32 %v1843, %v1856
        %v1858 = vadd.f32 %v1857, 0.014752088
        %v1859 = vmul.f32 %v1843, %v1858
        %v1860 = vadd.f32 %v1859, 0.112945676
        %v1861 = vmul.f32 %v1843, %v1860
        %v1862 = vadd.f32 %v1861, 0.4994258
        %v1863 = vmul.f32 %v1843, %v1862
        %v1864 = vadd.f32 %v1863, 1.0
        %v1865 = vrcp.pop %v1864
        %v1866 = vmul.f32 %v1864, %v1865
        %v1867 = vsub.f32 1.0, %v1866
        %v1868 = vmul.f32 %v1865, %v1867
        %v1869 = vadd.f32 %v1865, %v1868
        %vm1870 = vweird.f32 %v1864
        %vm1871 = vweird.f32 %v1865
        %vm1872 = vmor %vm1870, %vm1871
        %v1873 = vsel %vm1872, %v1865, %v1869
        %v1874 = vand.u32 2147483647, %v1864
        %vm1875 = vcmp.eq.f32.partialorder %v1874, 8.507059e+37
        %v1876 = vand.u32 %v1864, 2147483648
        %v1877 = vor.u32 1.1754944e-38, %v1876
        %v1878 = vsel %vm1875, %v1877, %v1873
        %v1879 = vmul.f32 %v1854, %v1878
        %v1880 = vmin.f32 %v1879, 1.0
        %v1881 = vmax.f32 %v1880, -1.0
        %v1882 = vmul.f32 %v1841, %v1841
        %v1883 = vmin.f32 16.0, %v1882
        %v1884 = vmul.f32 %v1883, 2.1237322e-06
        %v1885 = vadd.f32 %v1884, 0.00028619796
        %v1886 = vmul.f32 %v1883, %v1885
        %v1887 = vadd.f32 %v1886, 0.0036580483
        %v1888 = vmul.f32 %v1883, %v1887
        %v1889 = vadd.f32 %v1888, 0.05243302
        %v1890 = vmul.f32 %v1883, %v1889
        %v1891 = vadd.f32 %v1890, 0.18741608
        %v1892 = vmul.f32 %v1883, %v1891
        %v1893 = vadd.f32 %v1892, 1.1283791
        %v1894 = vmul.f32 %v1841, %v1893
        %v1895 = vmul.f32 %v1883, 3.8918573e-05
        %v1896 = vadd.f32 %v1895, 0.001143296
        %v1897 = vmul.f32 %v1883, %v1896
        %v1898 = vadd.f32 %v1897, 0.014752088
        %v1899 = vmul.f32 %v1883, %v1898
        %v1900 = vadd.f32 %v1899, 0.112945676
        %v1901 = vmul.f32 %v1883, %v1900
        %v1902 = vadd.f32 %v1901, 0.4994258
        %v1903 = vmul.f32 %v1883, %v1902
        %v1904 = vadd.f32 %v1903, 1.0
        %v1905 = vrcp.pop %v1904
        %v1906 = vmul.f32 %v1904, %v1905
        %v1907 = vsub.f32 1.0, %v1906
        %v1908 = vmul.f32 %v1905, %v1907
        %v1909 = vadd.f32 %v1905, %v1908
        %vm1910 = vweird.f32 %v1904
        %vm1911 = vweird.f32 %v1905
        %vm1912 = vmor %vm1910, %vm1911
        %v1913 = vsel %vm1912, %v1905, %v1909
        %v1914 = vand.u32 2147483647, %v1904
        %vm1915 = vcmp.eq.f32.partialorder %v1914, 8.507059e+37
        %v1916 = vand.u32 %v1904, 2147483648
        %v1917 = vor.u32 1.1754944e-38, %v1916
        %v1918 = vsel %vm1915, %v1917, %v1913
        %v1919 = vmul.f32 %v1894, %v1918
        %v1920 = vmin.f32 %v1919, 1.0
        %v1921 = vmax.f32 %v1920, -1.0
        %v1922 = vadd.f32 %v1881, 1.0
        %v1923 = vadd.f32 %v1921, 1.0
        %v1924 = vmul.f32 %v1838, %v1922
        %v1925 = vmul.f32 %v1839, %v1923
        %v1926 = vpack.c.bf16 %v1925, %v1924
        %v1927 = vld [vmem:[%s919] sm:$0xf]
        %v1928 = vld [vmem:[%s919 + $0x4] sm:$0xf]
        %v1929 = vld [vmem:[%s919 + $0x8] sm:$0xf]
        %v1930 = vld [vmem:[%s919 + $0xc] sm:$0xf]
        %v1931 = vld [vmem:[%s919 + $0x10] sm:$0xf]
        %v1932 = vld [vmem:[%s919 + $0x14] sm:$0xf]
        %v1933 = vld [vmem:[%s919 + $0x18] sm:$0xf]
        %v1934 = vld [vmem:[%s919 + $0x1c] sm:$0xf]
        %v1935 = vld [vmem:[%s922] sm:$0x1]
        %v1937 = vperm.slane %v1935, 0
        %v1947 = vunpack.c.l.b16 %v1927
        %v1948 = vunpack.c.l.b16 %v1928
        %v1949 = vunpack.c.l.b16 %v1929
        %v1950 = vunpack.c.l.b16 %v1930
        %v1951 = vunpack.c.l.b16 %v1931
        %v1952 = vunpack.c.l.b16 %v1932
        %v1953 = vunpack.c.l.b16 %v1933
        %v1954 = vunpack.c.l.b16 %v1934
        %v1955 = vpack.c.b16 %v1948, %v1947
        %v1956 = vpack.c.b16 %v1950, %v1949
        %v1957 = vpack.c.b16 %v1952, %v1951
        %v1958 = vpack.c.b16 %v1954, %v1953
        %vm1963 = vcmask 523264
        %v1965 = vsel %vm1963, %v1926, 0
        %1967 = vmatpush.bf16.msra.mxu0 0
        %1968 = vmatpush.bf16.msra.mxu0 0
        %1969 = vmatpush.bf16.msra.mxu0 0
        %1970 = vmatpush.bf16.msra.mxu0 0
        %1971 = vmatpush.bf16.msra.mxu0 %v1958
        %1972 = vmatpush.bf16.msra.mxu0 %v1957
        %1973 = vmatpush.bf16.msra.mxu0 %v1956
        %1974 = vmatpush.bf16.msra.mxu0 %v1955
        %1975 = vmatmul.bf16.gmra.mxu0 %v1965
        %v1976 = vpop.f32.mrf.mxu0
        %v1977 = vadd.f32 %v1937, %v1976
        %v1978 = vpop.f32.mrf.mxu0
        %v1979 = vadd.f32 %v1937, %v1978
        %1980 = vdwg.mxu0
        %v1981 = vadd.f32 %v1977, %v1798
        %v1982 = vadd.f32 %v1979, %v1799
        %v1983 = vld [vmem:[%s925] sm:$0x1]
        %v1984 = vld [vmem:[%s778] sm:$0x1]
        %v1985 = vsel %vm959, %v1981, 0.0
        %1986 = vadd.xlane.f32.xlu0 %v1985
        %v1987 = vpop.xlane.xlu0 %1986
        %v1988 = vsel %vm959, %v1982, 0.0
        %1989 = vadd.xlane.f32.xlu0 %v1988
        %v1990 = vpop.xlane.xlu0 %1989
        %v1991 = vmul.f32 %v1987, %v1751
        %v1992 = vmul.f32 %v1990, %v1751
        %v1993 = vsub.f32 %v1981, %v1991
        %v1994 = vsub.f32 %v1982, %v1992
        %v1995 = vmul.f32 %v1993, %v1993
        %v1996 = vmul.f32 %v1994, %v1994
        %v1997 = vsel %vm959, %v1995, 0.0
        %1998 = vadd.xlane.f32.xlu0 %v1997
        %v1999 = vpop.xlane.xlu0 %1998
        %v2000 = vsel %vm959, %v1996, 0.0
        %2001 = vadd.xlane.f32.xlu0 %v2000
        %v2002 = vpop.xlane.xlu0 %2001
        %v2003 = vmul.f32 %v1999, %v1751
        %v2004 = vmul.f32 %v2002, %v1751
        %v2005 = vadd.f32 %v2003, 1e-12
        %v2006 = vadd.f32 %v2004, 1e-12
        %v2007 = vrsqrt.pop %v2005
        %v2008 = vmul.f32 %v2007, %v2005
        %v2009 = vmul.f32 %v2008, %v2007
        %v2010 = vmul.f32 0.5, %v2009
        %v2011 = vsub.f32 1.5, %v2010
        %v2012 = vmul.f32 %v2007, %v2011
        %vm2013 = vweird.f32 %v2005
        %vm2014 = vweird.f32 %v2007
        %vm2015 = vmor %vm2013, %vm2014
        %v2016 = vsel %vm2015, %v2007, %v2012
        %v2017 = vrsqrt.pop %v2006
        %v2018 = vmul.f32 %v2017, %v2006
        %v2019 = vmul.f32 %v2018, %v2017
        %v2020 = vmul.f32 0.5, %v2019
        %v2021 = vsub.f32 1.5, %v2020
        %v2022 = vmul.f32 %v2017, %v2021
        %vm2023 = vweird.f32 %v2006
        %vm2024 = vweird.f32 %v2017
        %vm2025 = vmor %vm2023, %vm2024
        %v2026 = vsel %vm2025, %v2017, %v2022
        %v2027 = vmul.f32 %v1993, %v2016
        %v2028 = vmul.f32 %v1994, %v2026
        %v2030 = vperm.slane %v1983, 0
        %v2032 = vmul.f32 %v2027, %v2030
        %v2033 = vmul.f32 %v2028, %v2030
        %v2035 = vperm.slane %v1984, 0
        %v2037 = vadd.f32 %v2032, %v2035
        %v2038 = vadd.f32 %v2033, %v2035
        %2039 = vst.msk [vmem:[#allocation13] sm:$0xff] %vm959, %v2037
        %2040 = vst.msk [vmem:[#allocation13 + $0x8] sm:$0xff] %vm959, %v2038
        // Predicated region
        $region125: #{tpu_custom_call.1} parent=91 // pred_check
          %p2041 = pneg %p503
        $region126: #{tpu_custom_call.1} parent=91 // pred_check_branch
          %2043 = sbr.rel (%p2041) target = $region128
        $region127: #{tpu_custom_call.1} parent=91 // pred_region
          %2045 = vsyncadd [#allocation5], 0
          %s2046 = sshll.u32 [#allocation13], 4
          %s2047 = int_to_ptr.vmem [resolvable:$true] %s2046
          %s2048 = sshll.u32 %s18, 4
          %s2049 = int_to_ptr.hbm [resolvable:$true] %s2048
          %2054 = dma.vmem_to_hbm [thread:$0]  %s2047, 256, %s2049, [#allocation5], 128, 128, 8
        $region128: #{tpu_custom_call.1} parent=91 // pred_fallthru
          _
        // Predicated region
        $region129: #{tpu_custom_call.1} parent=91 // pred_check
          %p2055 = pneg %p503
        $region130: #{tpu_custom_call.1} parent=91 // pred_check_branch
          %2057 = sbr.rel (%p2055) target = $region132
        $region131: #{tpu_custom_call.1} parent=91 // pred_region
          %2059 = dma.done [#allocation5], 256
        $region132: #{tpu_custom_call.1} parent=91 // pred_fallthru
          _
      $region92: #{tpu_custom_call.1} parent=5 // pred_fallthru
        _
      %p2060 = scmp.le.s32.totalorder 2, %s27
      // Predicated region
      $region133: #{tpu_custom_call.1} parent=5 // pred_check
        %p2061 = pneg %p2060
      $region134: #{tpu_custom_call.1} parent=5 // pred_check_branch
        %2063 = sbr.rel (%p2061) target = $region136
      $region135: #{tpu_custom_call.1} parent=5 // pred_region
        %s2064 = ssub.s32 %s27, 2
      $region136: #{tpu_custom_call.1} parent=5 // pred_fallthru
        _
    $region6: #{tpu_custom_call.1} parent=1 // loop_footer
      %s31 = sadd.s32 1, %s27
    $region7: #{tpu_custom_call.1} parent=1 // loop_footer_branch
      %26 = sbr.rel target = $region3
    $region8: #{tpu_custom_call.1} parent=1 // loop_exit
      _
    %2065 = vsyncpa [#allocation4], 1
    %s2066 = scalar_lea.sflag [#allocation4], 1
    %2067 = vsyncpa %s2066, 1
    %2068 = vsyncpa [#allocation7], 1
    %2069 = vsyncpa [#allocation5], 1
    %s2070 = scalar_lea.sflag [#allocation5], 1
    %2071 = vsyncpa %s2070, 1

</llo_original>
